<compile_context>
chip_gen: v5e
topology: v5e:2x2
jax: 0.10.0
libtpu: 0.0.40
codegen_flags: <defaults>
</compile_context>

<pallas_src>
import functools

import jax
import jax.numpy as jnp
import numpy as np
from jax.experimental import pallas as pl
from jax.experimental.pallas import tpu as pltpu

BN_EPS = 1e-5


# ----------------------------------------------------------------------------
# Helpers
# ----------------------------------------------------------------------------
def _round_up(x, m):
    return ((x + m - 1) // m) * m


def _pick_tiles(M, K, N):
    """Shape-aware tile selection for the fused matmul kernel."""
    # rows (M)
    if M < 256:
        tm = _round_up(M, 8)
    elif M >= 4096 and N <= 256:
        tm = 512
    else:
        tm = 256
    # cols (N)
    if N <= 128:
        tn = N
    elif N < 512:
        tn = 256 if N % 256 == 0 else 128
    elif N >= 1024 and M <= 2048:
        tn = 512
    else:
        tn = 256
    # reduction (K)
    if K <= 128:
        tk = K
    elif K >= 2048:
        tk = 1024
    elif K >= 512:
        tk = 512
    elif K >= 256:
        tk = 256
    else:
        tk = _round_up(K, 128)
    return tm, tk, tn


# ----------------------------------------------------------------------------
# Kernel 1: fused matmul + BN affine (+ residual) (+ ReLU)
# ----------------------------------------------------------------------------
def _matmul_bn_act_kernel(*refs, relu, has_res):
    if has_res:
        x_ref, w_ref, s_ref, b_ref, r_ref, o_ref, acc_ref = refs
    else:
        x_ref, w_ref, s_ref, b_ref, o_ref, acc_ref = refs

    @pl.when(pl.program_id(2) == 0)
    def _():
        acc_ref[...] = jnp.zeros_like(acc_ref)

    acc_ref[...] += jnp.dot(x_ref[...], w_ref[...],
                            preferred_element_type=jnp.float32)

    @pl.when(pl.program_id(2) == pl.num_programs(2) - 1)
    def _():
        y = acc_ref[...] * s_ref[...] + b_ref[...]
        if has_res:
            y = y + r_ref[...].astype(jnp.float32)
        if relu:
            y = jnp.maximum(y, 0.0)
        o_ref[...] = y.astype(o_ref.dtype)


def matmul_bn_act(X, W, scale, shift, residual, *, relu, out_dtype):
    """out = maybe_relu((X @ W) * scale + shift [+ residual])."""
    M, K = X.shape
    _, N = W.shape
    tm, tk, tn = _pick_tiles(M, K, N)
    Mp, Kp, Np = _round_up(M, tm), _round_up(K, tk), _round_up(N, tn)

    X = X.astype(jnp.bfloat16)
    W = W.astype(jnp.bfloat16)
    if (Mp, Kp) != (M, K):
        X = jnp.pad(X, ((0, Mp - M), (0, Kp - K)))
    if (Kp, Np) != (K, N):
        W = jnp.pad(W, ((0, Kp - K), (0, Np - N)))
    s2 = scale.reshape(1, N).astype(jnp.float32)
    b2 = shift.reshape(1, N).astype(jnp.float32)
    if Np != N:
        s2 = jnp.pad(s2, ((0, 0), (0, Np - N)))
        b2 = jnp.pad(b2, ((0, 0), (0, Np - N)))

    in_specs = [
        pl.BlockSpec((tm, tk), lambda i, j, k: (i, k)),
        pl.BlockSpec((tk, tn), lambda i, j, k: (k, j)),
        pl.BlockSpec((1, tn), lambda i, j, k: (0, j)),
        pl.BlockSpec((1, tn), lambda i, j, k: (0, j)),
    ]
    args = [X, W, s2, b2]
    has_res = residual is not None
    if has_res:
        R = residual.astype(jnp.bfloat16)
        if (Mp, Np) != (M, N):
            R = jnp.pad(R, ((0, Mp - M), (0, Np - N)))
        in_specs.append(pl.BlockSpec((tm, tn), lambda i, j, k: (i, j)))
        args.append(R)

    grid = (Mp // tm, Np // tn, Kp // tk)
    out = pl.pallas_call(
        functools.partial(_matmul_bn_act_kernel, relu=relu, has_res=has_res),
        out_shape=jax.ShapeDtypeStruct((Mp, Np), out_dtype),
        grid_spec=pltpu.PrefetchScalarGridSpec(
            num_scalar_prefetch=0,
            grid=grid,
            in_specs=in_specs,
            out_specs=pl.BlockSpec((tm, tn), lambda i, j, k: (i, j)),
            scratch_shapes=[pltpu.VMEM((tm, tn), jnp.float32)],
        ),
        compiler_params=pltpu.CompilerParams(
            dimension_semantics=("parallel", "parallel", "arbitrary")),
    )(*args)
    if (Mp, Np) != (M, N):
        out = out[:M, :N]
    return out


# ----------------------------------------------------------------------------
# Kernel 2: implicit-im2col 3x3 (dilated) stride-1 conv + BN + ReLU
# ----------------------------------------------------------------------------
def _conv3x3_kernel(x_ref, w_ref, s_ref, b_ref, o_ref, acc_ref, *,
                    kh, kw, dil, th, wo, relu):
    i = pl.program_id(1)
    k = pl.program_id(3)

    @pl.when(k == 0)
    def _():
        acc_ref[...] = jnp.zeros_like(acc_ref)

    tc = x_ref.shape[-1]
    row0 = i * th
    for ky in range(kh):
        for kx in range(kw):
            win = x_ref[0, pl.ds(row0 + ky * dil, th), pl.ds(kx * dil, wo), :]
            acc_ref[...] += jnp.dot(win.reshape(th * wo, tc),
                                    w_ref[ky * kw + kx],
                                    preferred_element_type=jnp.float32)

    @pl.when(k == pl.num_programs(3) - 1)
    def _():
        y = acc_ref[...] * s_ref[...] + b_ref[...]
        if relu:
            y = jnp.maximum(y, 0.0)
        tn = o_ref.shape[-1]
        o_ref[...] = y.reshape(1, th, wo, tn).astype(o_ref.dtype)


@functools.partial(jax.jit, static_argnames=("dilation", "relu", "out_dtype"))
def conv3x3_bn_act(x, w, scale, shift, *, dilation, relu,
                   out_dtype=jnp.bfloat16):
    """3x3 stride-1 conv with padding == dilation, BN folded, optional ReLU."""
    B, H, W_, Cin = x.shape
    KH, KW, _, Cout = w.shape
    pad = dilation
    Ho, Wo = H, W_
    Hp, Wp = H + 2 * pad, W_ + 2 * pad

    x = x.astype(jnp.bfloat16)
    w = w.astype(jnp.bfloat16)
    xp = jnp.pad(x, ((0, 0), (pad, pad), (pad, pad), (0, 0)))
    wr = w.reshape(KH * KW, Cin, Cout)
    s2 = scale.reshape(1, Cout).astype(jnp.float32)
    b2 = shift.reshape(1, Cout).astype(jnp.float32)

    tn = Cout if (Cout <= 256 or Cout % 256 != 0) else 256
    tc = Cin if (Cin <= 256 or Cin % 256 != 0) else 256
    th = min(Ho, max(8, 1024 // Wo))
    if Ho % th != 0:
        th = Ho

    grid = (B, Ho // th, Cout // tn, Cin // tc)
    kernel = functools.partial(_conv3x3_kernel, kh=KH, kw=KW, dil=dilation,
                               th=th, wo=Wo, relu=relu)
    return pl.pallas_call(
        kernel,
        out_shape=jax.ShapeDtypeStruct((B, Ho, Wo, Cout), out_dtype),
        grid_spec=pltpu.PrefetchScalarGridSpec(
            num_scalar_prefetch=0,
            grid=grid,
            in_specs=[
                pl.BlockSpec((1, Hp, Wp, tc), lambda b, i, j, k: (b, 0, 0, k)),
                pl.BlockSpec((KH * KW, tc, tn), lambda b, i, j, k: (0, k, j)),
                pl.BlockSpec((1, tn), lambda b, i, j, k: (0, j)),
                pl.BlockSpec((1, tn), lambda b, i, j, k: (0, j)),
            ],
            out_specs=pl.BlockSpec((1, th, Wo, tn),
                                   lambda b, i, j, k: (b, i, 0, j)),
            scratch_shapes=[pltpu.VMEM((th * Wo, tn), jnp.float32)],
        ),
        compiler_params=pltpu.CompilerParams(
            dimension_semantics=("parallel", "parallel", "parallel",
                                 "arbitrary"),
            vmem_limit_bytes=32 * 1024 * 1024),
    )(xp, wr, s2, b2)


# ----------------------------------------------------------------------------
# Generic conv (im2col / 1x1) via the fused matmul kernel
# ----------------------------------------------------------------------------
@functools.partial(jax.jit,
                   static_argnames=("stride", "padding", "dilation", "relu",
                                    "out_dtype"))
def conv_generic(x, w, scale, shift, residual=None, *, stride, padding,
                 dilation, relu, out_dtype=jnp.bfloat16):
    B, H, W_, Cin = x.shape
    KH, KW, _, Cout = w.shape
    Ho = (H + 2 * padding - dilation * (KH - 1) - 1) // stride + 1
    Wo = (W_ + 2 * padding - dilation * (KW - 1) - 1) // stride + 1

    if KH == 1 and KW == 1 and padding == 0:
        xs = x[:, ::stride, ::stride, :] if stride > 1 else x
        X = xs.reshape(B * Ho * Wo, Cin)
    else:
        xp = jnp.pad(x, ((0, 0), (padding, padding), (padding, padding),
                         (0, 0)))
        cols = []
        for ky in range(KH):
            for kx in range(KW):
                y0 = ky * dilation
                x0 = kx * dilation
                cols.append(xp[:, y0:y0 + (Ho - 1) * stride + 1:stride,
                                  x0:x0 + (Wo - 1) * stride + 1:stride, :])
        X = jnp.concatenate(cols, axis=-1).reshape(B * Ho * Wo, KH * KW * Cin)

    Wm = w.reshape(KH * KW * Cin, Cout)
    R = None if residual is None else residual.reshape(B * Ho * Wo, Cout)
    Y = matmul_bn_act(X, Wm, scale, shift, R, relu=relu, out_dtype=out_dtype)
    return Y.reshape(B, Ho, Wo, Cout)


# One-time probe: use the implicit 3x3 kernel only if it compiles and agrees
# numerically with the im2col reference path on this backend.
_IMPLICIT_3X3_OK = None


def _implicit_3x3_supported():
    global _IMPLICIT_3X3_OK
    if _IMPLICIT_3X3_OK is None:
        try:
            k = jax.random.PRNGKey(42)
            x = jax.random.normal(jax.random.fold_in(k, 0), (1, 32, 32, 128),
                                  jnp.float32).astype(jnp.bfloat16)
            w = (jax.random.normal(jax.random.fold_in(k, 1), (3, 3, 128, 128),
                                   jnp.float32) / 34.0).astype(jnp.bfloat16)
            s = jnp.ones((128,), jnp.float32)
            b = jnp.zeros((128,), jnp.float32)
            a = conv3x3_bn_act(x, w, s, b, dilation=1, relu=True,
                               out_dtype=jnp.float32)
            r = conv_generic(x, w, s, b, None, stride=1, padding=1,
                             dilation=1, relu=True, out_dtype=jnp.float32)
            ok = np.allclose(np.asarray(a, np.float32),
                             np.asarray(r, np.float32),
                             rtol=5e-2, atol=5e-2)
            _IMPLICIT_3X3_OK = bool(ok)
        except Exception:
            _IMPLICIT_3X3_OK = False
    return _IMPLICIT_3X3_OK


def conv2d_bn_act(x, w, scale, shift, residual=None, *, stride, padding,
                  dilation, relu, out_dtype=jnp.bfloat16):
    """Route a conv to the implicit 3x3 kernel or the im2col matmul kernel."""
    B, H, W_, Cin = x.shape
    KH, KW, _, Cout = w.shape
    if (KH == 3 and KW == 3 and stride == 1 and padding == dilation
            and residual is None and W_ % 16 == 0 and H % 8 == 0
            and _implicit_3x3_supported()):
        return conv3x3_bn_act(x, w, scale, shift, dilation=dilation,
                              relu=relu, out_dtype=out_dtype)
    return conv_generic(x, w, scale, shift, residual, stride=stride,
                        padding=padding, dilation=dilation, relu=relu,
                        out_dtype=out_dtype)


def cbr_fwd(p, x, stride, padding, dilation, relu=True, residual=None,
            out_dtype=jnp.bfloat16):
    return conv2d_bn_act(x, p["w"], p["scale"], p["shift"], residual,
                         stride=stride, padding=padding, dilation=dilation,
                         relu=relu, out_dtype=out_dtype)


# ----------------------------------------------------------------------------
# Plain-JAX glue ops (pooling / interpolation)
# ----------------------------------------------------------------------------
@jax.jit
def maxpool_3x3_s2_p1(x):
    B, H, W_, C = x.shape
    Ho = (H + 2 - 3) // 2 + 1
    Wo = (W_ + 2 - 3) // 2 + 1
    xp = jnp.pad(x, ((0, 0), (1, 1), (1, 1), (0, 0)),
                 constant_values=-jnp.inf)
    out = None
    for ky in range(3):
        for kx in range(3):
            patch = xp[:, ky:ky + (Ho - 1) * 2 + 1:2,
                          kx:kx + (Wo - 1) * 2 + 1:2, :]
            out = patch if out is None else jnp.maximum(out, patch)
    return out


@functools.partial(jax.jit, static_argnames=("out_size",))
def adaptive_avg_pool(x, out_size):
    B, H, W_, C = x.shape
    xf = x.astype(jnp.float32)
    rows = []
    for i in range(out_size):
        h0 = (i * H) // out_size
        h1 = -(-((i + 1) * H) // out_size)
        cols = []
        for j in range(out_size):
            w0 = (j * W_) // out_size
            w1 = -(-((j + 1) * W_) // out_size)
            cols.append(jnp.mean(xf[:, h0:h1, w0:w1, :], axis=(1, 2)))
        rows.append(jnp.stack(cols, axis=1))
    return jnp.stack(rows, axis=1)  # (B, out, out, C) f32


def _interp_coords(out_size, in_size):
    if out_size > 1 and in_size > 1:
        src = jnp.arange(out_size, dtype=jnp.float32) * (
            (in_size - 1) / (out_size - 1))
    else:
        src = jnp.zeros((out_size,), jnp.float32)
    i0 = jnp.clip(jnp.floor(src).astype(jnp.int32), 0, in_size - 1)
    i1 = jnp.clip(i0 + 1, 0, in_size - 1)
    w = src - i0.astype(jnp.float32)
    return i0, i1, w


@functools.partial(jax.jit, static_argnames=("oh", "ow"))
def interp_bilinear_nhwc(x, oh, ow):
    B, H, W_, C = x.shape
    x = x.astype(jnp.float32)
    y0, y1, wy = _interp_coords(oh, H)
    x0, x1, wx = _interp_coords(ow, W_)
    rows0 = x[:, y0]
    rows1 = x[:, y1]
    g00 = rows0[:, :, x0]
    g01 = rows0[:, :, x1]
    g10 = rows1[:, :, x0]
    g11 = rows1[:, :, x1]
    wx_ = wx[None, None, :, None]
    wy_ = wy[None, :, None, None]
    top = g00 * (1.0 - wx_) + g01 * wx_
    bot = g10 * (1.0 - wx_) + g11 * wx_
    return top * (1.0 - wy_) + bot * wy_


@functools.partial(jax.jit, static_argnames=("oh", "ow"))
def interp_bilinear_nchw(x, oh, ow):
    # Lane-dense (last axis = W) upsample for the small-channel logits.
    B, C, H, W_ = x.shape
    x = x.astype(jnp.float32)
    y0, y1, wy = _interp_coords(oh, H)
    x0, x1, wx = _interp_coords(ow, W_)
    rows0 = x[:, :, y0, :]
    rows1 = x[:, :, y1, :]
    g00 = rows0[:, :, :, x0]
    g01 = rows0[:, :, :, x1]
    g10 = rows1[:, :, :, x0]
    g11 = rows1[:, :, :, x1]
    wx_ = wx[None, None, None, :]
    wy_ = wy[None, None, :, None]
    top = g00 * (1.0 - wx_) + g01 * wx_
    bot = g10 * (1.0 - wx_) + g11 * wx_
    return top * (1.0 - wy_) + bot * wy_


# ----------------------------------------------------------------------------
# Parameter initialization (deterministic, synthetic) + BN folding
# ----------------------------------------------------------------------------
class KeyGen:
    def __init__(self, key):
        self.key = key
        self.i = 0

    def __call__(self):
        k = jax.random.fold_in(self.key, self.i)
        self.i += 1
        return k


def init_conv(key, cin, cout, k):
    fan_in = cin * k * k
    return (jax.random.normal(key, (k, k, cin, cout), jnp.float32)
            * (1.0 / np.sqrt(fan_in)))


def init_bn(kg, c):
    return {
        "gamma": 1.0 + 0.1 * jax.random.normal(kg(), (c,), jnp.float32),
        "beta": 0.1 * jax.random.normal(kg(), (c,), jnp.float32),
        "mean": 0.1 * jax.random.normal(kg(), (c,), jnp.float32),
        "var": 0.5 + jax.random.uniform(kg(), (c,), jnp.float32),
    }


def init_cbr(kg, cin, cout, k):
    return {"w": init_conv(kg(), cin, cout, k), "bn": init_bn(kg, cout)}


def init_bottleneck_psp(kg, cin, mid, cout):
    return {
        "cbr_1": init_cbr(kg, cin, mid, 1),
        "cbr_2": init_cbr(kg, mid, mid, 3),
        "cb_3": init_cbr(kg, mid, cout, 1),
        "cb_residual": init_cbr(kg, cin, cout, 1),
    }


def init_bottleneck_identity(kg, cin, mid):
    return {
        "cbr_1": init_cbr(kg, cin, mid, 1),
        "cbr_2": init_cbr(kg, mid, mid, 3),
        "cb_3": init_cbr(kg, mid, cin, 1),
    }


def init_res_block(kg, n_blocks, cin, mid, cout):
    blocks = [init_bottleneck_psp(kg, cin, mid, cout)]
    for _ in range(n_blocks - 1):
        blocks.append(init_bottleneck_identity(kg, cout, mid))
    return blocks


def init_pspnet(key, n_classes):
    kg = KeyGen(key)
    return {
        "feature_conv": {
            "cbnr_1": init_cbr(kg, 3, 64, 3),
            "cbnr_2": init_cbr(kg, 64, 64, 3),
            "cbnr_3": init_cbr(kg, 64, 128, 3),
        },
        "res1": init_res_block(kg, 3, 128, 64, 256),
        "res2": init_res_block(kg, 4, 256, 128, 512),
        "dres1": init_res_block(kg, 6, 512, 256, 1024),
        "dres2": init_res_block(kg, 3, 1024, 512, 2048),
        "pyramid": [init_cbr(kg, 2048, 512, 1) for _ in range(4)],
        "decode": {
            "cbr": init_cbr(kg, 4096, 512, 3),
            "cls_w": init_conv(kg(), 512, n_classes, 1),
            "cls_b": 0.01 * jax.random.normal(kg(), (n_classes,), jnp.float32),
        },
    }


def _fold_cbr(p):
    bn = p["bn"]
    scale = bn["gamma"] * jax.lax.rsqrt(bn["var"] + BN_EPS)
    shift = bn["beta"] - bn["mean"] * scale
    return {"w": p["w"].astype(jnp.bfloat16),
            "scale": scale.astype(jnp.float32),
            "shift": shift.astype(jnp.float32)}


def fold_params(params):
    def fold_block(blk):
        return {k: _fold_cbr(v) for k, v in blk.items()}
    return {
        "feature_conv": fold_block(params["feature_conv"]),
        "res1": [fold_block(b) for b in params["res1"]],
        "res2": [fold_block(b) for b in params["res2"]],
        "dres1": [fold_block(b) for b in params["dres1"]],
        "dres2": [fold_block(b) for b in params["dres2"]],
        "pyramid": [_fold_cbr(p) for p in params["pyramid"]],
        "decode": {
            "cbr": _fold_cbr(params["decode"]["cbr"]),
            "cls_w": params["decode"]["cls_w"].astype(jnp.bfloat16),
            "cls_b": params["decode"]["cls_b"].astype(jnp.float32),
        },
    }


# ----------------------------------------------------------------------------
# PSPNet forward (expects folded params)
# ----------------------------------------------------------------------------
def bottleneck_psp_fwd(p, x, stride, dilation):
    h = cbr_fwd(p["cbr_1"], x, 1, 0, 1)
    h = cbr_fwd(p["cbr_2"], h, stride, dilation, dilation)
    r = cbr_fwd(p["cb_residual"], x, stride, 0, 1, relu=False)
    # relu(cb_3(h) + r) fused into the cb_3 matmul epilogue.
    return cbr_fwd(p["cb_3"], h, 1, 0, 1, relu=True, residual=r)


def bottleneck_identity_fwd(p, x, dilation):
    h = cbr_fwd(p["cbr_1"], x, 1, 0, 1)
    h = cbr_fwd(p["cbr_2"], h, 1, dilation, dilation)
    return cbr_fwd(p["cb_3"], h, 1, 0, 1, relu=True, residual=x)


def res_block_fwd(blocks, x, stride, dilation):
    x = bottleneck_psp_fwd(blocks[0], x, stride, dilation)
    for p in blocks[1:]:
        x = bottleneck_identity_fwd(p, x, dilation)
    return x


def pyramid_pooling_fwd(plist, x, height, width, pool_sizes):
    outs = [x]
    for p, s in zip(plist, pool_sizes):
        y = adaptive_avg_pool(x, s)
        y = cbr_fwd(p, y, 1, 0, 1)
        y = interp_bilinear_nhwc(y, height, width).astype(jnp.bfloat16)
        outs.append(y)
    return jnp.concatenate(outs, axis=-1)


def decode_fwd(p, x, height, width):
    x = cbr_fwd(p["cbr"], x, 1, 1, 1)
    # TODO(synk): Dropout2d(p=0.1) is identity in eval mode.
    n_classes = p["cls_w"].shape[-1]
    logits = conv2d_bn_act(x, p["cls_w"],
                           jnp.ones((n_classes,), jnp.float32), p["cls_b"],
                           None, stride=1, padding=0, dilation=1, relu=False,
                           out_dtype=jnp.float32)
    # Transpose to NCHW at 32x32 (cheap), then lane-dense bilinear upsample.
    logits = jnp.transpose(logits, (0, 3, 1, 2))
    return interp_bilinear_nchw(logits, height, width)


def pspnet_forward(params, x_nchw, img_size=256, img_size_8=32):
    # NCHW (PyTorch) -> NHWC bf16 (kernel layout)
    x = jnp.transpose(x_nchw, (0, 2, 3, 1)).astype(jnp.bfloat16)

    fc = params["feature_conv"]
    x = cbr_fwd(fc["cbnr_1"], x, 2, 1, 1)
    x = cbr_fwd(fc["cbnr_2"], x, 1, 1, 1)
    x = cbr_fwd(fc["cbnr_3"], x, 1, 1, 1)
    x = maxpool_3x3_s2_p1(x)

    x = res_block_fwd(params["res1"], x, stride=1, dilation=1)
    x = res_block_fwd(params["res2"], x, stride=2, dilation=1)
    x = res_block_fwd(params["dres1"], x, stride=1, dilation=2)
    x = res_block_fwd(params["dres2"], x, stride=1, dilation=4)

    x = pyramid_pooling_fwd(params["pyramid"], x, img_size_8, img_size_8,
                            pool_sizes=[6, 3, 2, 1])
    # decode_fwd already returns NCHW f32 logits at (img_size, img_size).
    return decode_fwd(params["decode"], x, img_size, img_size)


# ----------------------------------------------------------------------------
if __name__ == "__main__":
    key = jax.random.PRNGKey(0)
    n_classes = 4

    params = fold_params(init_pspnet(jax.random.fold_in(key, 1), n_classes))
    # PSPNet hardcodes img_size=256 / img_size_8=32, so the input spatial size
    # must be 256; batch is kept small (1).
    x = jax.random.normal(jax.random.fold_in(key, 2), (1, 3, 256, 256),
                          jnp.float32)

    out = pspnet_forward(params, x)
    out = jax.block_until_ready(out)

    assert out.shape == (1, n_classes, 256, 256), out.shape
    assert bool(jnp.all(jnp.isfinite(out)))
    print("KERNEL_OK")
</pallas_src>

<mosaic_0001>
module attributes {stable_mosaic.version = 11 : i64} {
  func.func @_matmul_bn_act_kernel(%arg0: i32, %arg1: i32, %arg2: i32, %arg3: memref<512x27xbf16, #tpu.memory_space<vmem>>, %arg4: memref<27x64xbf16, #tpu.memory_space<vmem>>, %arg5: memref<1x64xf32, #tpu.memory_space<vmem>>, %arg6: memref<1x64xf32, #tpu.memory_space<vmem>>, %arg7: memref<512x64xbf16, #tpu.memory_space<vmem>>, %arg8: memref<512x64xf32, #tpu.memory_space<vmem>>) attributes {dimension_semantics = [#tpu.dimension_semantics<parallel>, #tpu.dimension_semantics<parallel>, #tpu.dimension_semantics<arbitrary>], iteration_bounds = array<i64: 32, 1, 1>, scalar_prefetch = 0 : i64, scratch_operands = 1 : i64, tpu.core_type = #tpu.core_type<tc>, window_params = [{transform_indices = @transform_0, window_bounds = array<i64: 512, 27>}, {transform_indices = @transform_1, window_bounds = array<i64: 27, 64>}, {transform_indices = @transform_2, window_bounds = array<i64: 1, 64>}, {transform_indices = @transform_3, window_bounds = array<i64: 1, 64>}, {transform_indices = @transform_4, window_bounds = array<i64: 512, 64>}]} {
    %c0_i32 = arith.constant 0 : i32
    %0 = arith.cmpi eq, %arg2, %c0_i32 : i32
    %1 = arith.extui %0 : i1 to i32
    %c0_i32_0 = arith.constant 0 : i32
    %2 = arith.cmpi ne, %1, %c0_i32_0 : i32
    scf.if %2 {
      %cst_10 = arith.constant 0.000000e+00 : f32
      %12 = vector.broadcast %cst_10 : f32 to vector<512x64xf32>
      %c0_11 = arith.constant 0 : index
      %c0_12 = arith.constant 0 : index
      %13 = vector.load %arg8[%c0_11, %c0_12] : memref<512x64xf32, #tpu.memory_space<vmem>>, vector<512x64xf32>
      tpu.vector_store %arg8[%c0_11, %c0_12], %12 {strides = array<i32>} : memref<512x64xf32, #tpu.memory_space<vmem>>, vector<512x64xf32>,
    } else {
    }
    %c0 = arith.constant 0 : index
    %c0_1 = arith.constant 0 : index
    %3 = vector.load %arg8[%c0, %c0_1] : memref<512x64xf32, #tpu.memory_space<vmem>>, vector<512x64xf32>
    %c0_2 = arith.constant 0 : index
    %c0_3 = arith.constant 0 : index
    %4 = vector.load %arg3[%c0_2, %c0_3] : memref<512x27xbf16, #tpu.memory_space<vmem>>, vector<512x27xbf16>
    %c0_4 = arith.constant 0 : index
    %c0_5 = arith.constant 0 : index
    %5 = vector.load %arg4[%c0_4, %c0_5] : memref<27x64xbf16, #tpu.memory_space<vmem>>, vector<27x64xbf16>
    %cst = arith.constant dense<0.000000e+00> : vector<512x64xf32>
    %6 = tpu.matmul %4, %5, %cst {dimension_numbers = #tpu.dot_dimension_numbers<[1], [0], [0], [1], [0, 0, 1, 1], [], []>} : vector<512x27xbf16>, vector<27x64xbf16>, vector<512x64xf32> -> vector<512x64xf32>
    %7 = arith.addf %3, %6 : vector<512x64xf32>
    %c0_6 = arith.constant 0 : index
    %c0_7 = arith.constant 0 : index
    %8 = vector.load %arg8[%c0_6, %c0_7] : memref<512x64xf32, #tpu.memory_space<vmem>>, vector<512x64xf32>
    tpu.vector_store %arg8[%c0_6, %c0_7], %7 {strides = array<i32>} : memref<512x64xf32, #tpu.memory_space<vmem>>, vector<512x64xf32>,
    %c0_i32_8 = arith.constant 0 : i32
    %9 = arith.cmpi eq, %arg2, %c0_i32_8 : i32
    %10 = arith.extui %9 : i1 to i32
    %c0_i32_9 = arith.constant 0 : i32
    %11 = arith.cmpi ne, %10, %c0_i32_9 : i32
    scf.if %11 {
      %c0_10 = arith.constant 0 : index
      %c0_11 = arith.constant 0 : index
      %12 = vector.load %arg8[%c0_10, %c0_11] : memref<512x64xf32, #tpu.memory_space<vmem>>, vector<512x64xf32>
      %c0_12 = arith.constant 0 : index
      %c0_13 = arith.constant 0 : index
      %13 = vector.load %arg5[%c0_12, %c0_13] : memref<1x64xf32, #tpu.memory_space<vmem>>, vector<1x64xf32>
      %14 = vector.broadcast %13 : vector<1x64xf32> to vector<512x64xf32>
      %15 = arith.mulf %12, %14 : vector<512x64xf32>
      %c0_14 = arith.constant 0 : index
      %c0_15 = arith.constant 0 : index
      %16 = vector.load %arg6[%c0_14, %c0_15] : memref<1x64xf32, #tpu.memory_space<vmem>>, vector<1x64xf32>
      %17 = vector.broadcast %16 : vector<1x64xf32> to vector<512x64xf32>
      %18 = arith.addf %15, %17 : vector<512x64xf32>
      %cst_16 = arith.constant 0.000000e+00 : f32
      %19 = vector.broadcast %cst_16 : f32 to vector<512x64xf32>
      %20 = arith.maximumf %18, %19 : vector<512x64xf32>
      %21 = arith.truncf %20 : vector<512x64xf32> to vector<512x64xbf16>
      %c0_17 = arith.constant 0 : index
      %c0_18 = arith.constant 0 : index
      %22 = vector.load %arg7[%c0_17, %c0_18] : memref<512x64xbf16, #tpu.memory_space<vmem>>, vector<512x64xbf16>
      tpu.vector_store %arg7[%c0_17, %c0_18], %21 {strides = array<i32>} : memref<512x64xbf16, #tpu.memory_space<vmem>>, vector<512x64xbf16>,
    } else {
    }
    return
  }
  func.func @transform_0(%arg0: i32, %arg1: i32, %arg2: i32) -> (i32, i32) {
    %c0_i32 = arith.constant 0 : i32
    return %arg0, %arg2 : i32, i32
  }
  func.func @transform_1(%arg0: i32, %arg1: i32, %arg2: i32) -> (i32, i32) {
    %c0_i32 = arith.constant 0 : i32
    return %arg2, %arg1 : i32, i32
  }
  func.func @transform_2(%arg0: i32, %arg1: i32, %arg2: i32) -> (i32, i32) {
    %c0_i32 = arith.constant 0 : i32
    %c0_i32_0 = arith.constant 0 : i32
    return %c0_i32, %arg1 : i32, i32
  }
  func.func @transform_3(%arg0: i32, %arg1: i32, %arg2: i32) -> (i32, i32) {
    %c0_i32 = arith.constant 0 : i32
    %c0_i32_0 = arith.constant 0 : i32
    return %c0_i32, %arg1 : i32, i32
  }
  func.func @transform_4(%arg0: i32, %arg1: i32, %arg2: i32) -> (i32, i32) {
    %c0_i32 = arith.constant 0 : i32
    return %arg0, %arg1 : i32, i32
  }
}

</mosaic_0001>

<llo_original>
// kernel: conv_generic.1
$region0: #{conv_generic.1}
  #allocation0 [shape = 'u32[]', space=smem, size = 0x4, offset = 0x4, fixed_abs, tag = 'smem constant byte address 0x4 - core index']
  #allocation1 [shape = 'u32[72,128]{1,0:T(1,128)}', space=vmem, size = 0x9000, scoped, tag = 'internal scratch']
  #allocation2 [shape = 'f32[512,64]{1,0:T(8,128)}', space=vmem, size = 0x40000, scoped, tag = 'scratch operand']
  %s0 = inlined_call_operand.vmem [shape: bf16[16384,27], index: 0, kind: input, shape index: {}]
  %s1 = inlined_call_operand.vmem [shape: bf16[27,64], index: 1, kind: input, shape index: {}]
  %s2 = inlined_call_operand.vmem [shape: f32[1,64], index: 2, kind: input, shape index: {}]
  %s3 = inlined_call_operand.vmem [shape: f32[1,64], index: 3, kind: input, shape index: {}]
  %s4 = inlined_call_operand.vmem [shape: bf16[16384,64], index: 4, kind: output, shape index: {}]
  %s5 = sld [smem:[#allocation0]]
  $region57: #{conv_generic.1} parent=0
    _
  %s7 = ssub.s32 1, %s5
  %s8 = scalar_select 0, %s7, %s5
  loop: start=0, step=1, limit=34
  $region2: #{conv_generic.1} parent=0 // loop_pre_header
    _
  $region3: #{conv_generic.1} parent=0 // loop_header
    %s10 = sphi 0, %s14
    %p11 = scmp.ge.s32.totalorder %s10, 34
    %s17 = sphi 0, %s36
    %s18 = sphi 0, %s32
    %s19 = sphi 0, %s28
    %s20 = sphi 0, %s17
    %s21 = sphi 0, %s18
    %s22 = sphi 0, %s19
    %s23 = sphi 0, %s20
    %s24 = sphi 0, %s21
    %s25 = sphi 0, %s22
    %s41 = sphi 0, %s43
    %s44 = sphi 0, %s41
    %s45 = sphi 0, %s44
    %s61 = sphi 0, %s45
    %s69 = sphi 0, %s71
    %s72 = sphi 0, %s69
    %s73 = sphi 0, %s72
    %s89 = sphi 0, %s73
    %s95 = sphi 0, %s97
    %s98 = sphi 0, %s95
    %s99 = sphi 0, %s98
    %s115 = sphi 0, %s99
    %s121 = sphi 0, %s123
    %s124 = sphi 0, %s121
    %s125 = sphi 0, %s124
    %s141 = sphi 0, %s125
    %s149 = sphi 0, %s151
    %s152 = sphi 0, %s149
    %s153 = sphi 0, %s152
    %s169 = sphi 0, %s153
  $region4: #{conv_generic.1} parent=0 // loop_header_branch
    %13 = sbr.rel (%p11) target = $region8
  $region5: #{conv_generic.1} parent=0 // loop_body
    %s15 = ssub.s32 %s10, 1
    %s16 = ssub.s32 %s10, 2
    %s26 = sadd.s32 1, %s19
    %p27 = scmp.ge.s32.totalorder %s26, 1
    %s28 = scalar_select %p27, 0, %s26
    %s29 = sadd.s32 1, %s18
    %s30 = scalar_select %p27, %s29, %s18
    %p31 = scmp.ge.s32.totalorder %s30, 1
    %s32 = scalar_select %p31, 0, %s30
    %s33 = sadd.s32 1, %s17
    %s34 = scalar_select %p31, %s33, %s17
    %p35 = scmp.ge.s32.totalorder %s34, 32
    %s36 = scalar_select %p35, 0, %s34
    %s37 = ssub.s32 %s17, %s36
    %s38 = ssub.s32 %s19, %s28
    %s39 = sor.u32 %s37, %s38
    %p40 = scmp.eq.s32.totalorder %s39, 0
    %s42 = sadd.s32 %s41, 1
    %s43 = scalar_select %p40, %s41, %s42
    %p46 = pneg %p40
    %p47 = scmp.eq.s32.totalorder %s10, 31
    %p48 = por %p46, %p47
    %p49 = scmp.ne.s32.totalorder %s41, %s44
    %p50 = scmp.eq.s32.totalorder %s10, 0
    %p51 = por %p49, %p50
    %p52 = scmp.ne.s32.totalorder %s41, %s44
    %p53 = scmp.eq.s32.totalorder %s15, 31
    %p54 = por %p52, %p53
    %p55 = scmp.ne.s32.totalorder %s44, %s45
    %p56 = scmp.eq.s32.totalorder %s15, 0
    %p57 = por %p55, %p56
    %p58 = scmp.ne.s32.totalorder %s44, %s45
    %p59 = scmp.eq.s32.totalorder %s16, 31
    %p60 = por %p58, %p59
    %p62 = scmp.ne.s32.totalorder %s45, %s61
    %p63 = scmp.eq.s32.totalorder %s16, 0
    %p64 = por %p62, %p63
    %s65 = ssub.s32 %s19, %s28
    %s66 = ssub.s32 %s18, %s32
    %s67 = sor.u32 %s65, %s66
    %p68 = scmp.eq.s32.totalorder %s67, 0
    %s70 = sadd.s32 %s69, 1
    %s71 = scalar_select %p68, %s69, %s70
    %p74 = pneg %p68
    %p75 = scmp.eq.s32.totalorder %s10, 31
    %p76 = por %p74, %p75
    %p77 = scmp.ne.s32.totalorder %s69, %s72
    %p78 = scmp.eq.s32.totalorder %s10, 0
    %p79 = por %p77, %p78
    %p80 = scmp.ne.s32.totalorder %s69, %s72
    %p81 = scmp.eq.s32.totalorder %s15, 31
    %p82 = por %p80, %p81
    %p83 = scmp.ne.s32.totalorder %s72, %s73
    %p84 = scmp.eq.s32.totalorder %s15, 0
    %p85 = por %p83, %p84
    %p86 = scmp.ne.s32.totalorder %s72, %s73
    %p87 = scmp.eq.s32.totalorder %s16, 31
    %p88 = por %p86, %p87
    %p90 = scmp.ne.s32.totalorder %s73, %s89
    %p91 = scmp.eq.s32.totalorder %s16, 0
    %p92 = por %p90, %p91
    %s93 = ssub.s32 %s18, %s32
    %p94 = scmp.eq.s32.totalorder %s93, 0
    %s96 = sadd.s32 %s95, 1
    %s97 = scalar_select %p94, %s95, %s96
    %p100 = pneg %p94
    %p101 = scmp.eq.s32.totalorder %s10, 31
    %p102 = por %p100, %p101
    %p103 = scmp.ne.s32.totalorder %s95, %s98
    %p104 = scmp.eq.s32.totalorder %s10, 0
    %p105 = por %p103, %p104
    %p106 = scmp.ne.s32.totalorder %s95, %s98
    %p107 = scmp.eq.s32.totalorder %s15, 31
    %p108 = por %p106, %p107
    %p109 = scmp.ne.s32.totalorder %s98, %s99
    %p110 = scmp.eq.s32.totalorder %s15, 0
    %p111 = por %p109, %p110
    %p112 = scmp.ne.s32.totalorder %s98, %s99
    %p113 = scmp.eq.s32.totalorder %s16, 31
    %p114 = por %p112, %p113
    %p116 = scmp.ne.s32.totalorder %s99, %s115
    %p117 = scmp.eq.s32.totalorder %s16, 0
    %p118 = por %p116, %p117
    %s119 = ssub.s32 %s18, %s32
    %p120 = scmp.eq.s32.totalorder %s119, 0
    %s122 = sadd.s32 %s121, 1
    %s123 = scalar_select %p120, %s121, %s122
    %p126 = pneg %p120
    %p127 = scmp.eq.s32.totalorder %s10, 31
    %p128 = por %p126, %p127
    %p129 = scmp.ne.s32.totalorder %s121, %s124
    %p130 = scmp.eq.s32.totalorder %s10, 0
    %p131 = por %p129, %p130
    %p132 = scmp.ne.s32.totalorder %s121, %s124
    %p133 = scmp.eq.s32.totalorder %s15, 31
    %p134 = por %p132, %p133
    %p135 = scmp.ne.s32.totalorder %s124, %s125
    %p136 = scmp.eq.s32.totalorder %s15, 0
    %p137 = por %p135, %p136
    %p138 = scmp.ne.s32.totalorder %s124, %s125
    %p139 = scmp.eq.s32.totalorder %s16, 31
    %p140 = por %p138, %p139
    %p142 = scmp.ne.s32.totalorder %s125, %s141
    %p143 = scmp.eq.s32.totalorder %s16, 0
    %p144 = por %p142, %p143
    %s145 = ssub.s32 %s17, %s36
    %s146 = ssub.s32 %s18, %s32
    %s147 = sor.u32 %s145, %s146
    %p148 = scmp.eq.s32.totalorder %s147, 0
    %s150 = sadd.s32 %s149, 1
    %s151 = scalar_select %p148, %s149, %s150
    %p154 = pneg %p148
    %p155 = scmp.eq.s32.totalorder %s10, 31
    %p156 = por %p154, %p155
    %p157 = scmp.ne.s32.totalorder %s149, %s152
    %p158 = scmp.eq.s32.totalorder %s10, 0
    %p159 = por %p157, %p158
    %p160 = scmp.ne.s32.totalorder %s149, %s152
    %p161 = scmp.eq.s32.totalorder %s15, 31
    %p162 = por %p160, %p161
    %p163 = scmp.ne.s32.totalorder %s152, %s153
    %p164 = scmp.eq.s32.totalorder %s15, 0
    %p165 = por %p163, %p164
    %p166 = scmp.ne.s32.totalorder %s152, %s153
    %p167 = scmp.eq.s32.totalorder %s16, 31
    %p168 = por %p166, %p167
    %p170 = scmp.ne.s32.totalorder %s153, %s169
    %p171 = scmp.eq.s32.totalorder %s16, 0
    %p172 = por %p170, %p171
    %p173 = scmp.le.s32.totalorder 1, %s10
    %p174 = scmp.lt.s32.totalorder %s10, 33
    %p175 = pnand %p173, %p174
    %p176 = pneg %p175
    // Predicated region
    $region9: #{conv_generic.1} parent=5 // pred_check
      _
    $region10: #{conv_generic.1} parent=5 // pred_check_branch
      %178 = sbr.rel (%p175) target = $region12
    $region11: #{conv_generic.1} parent=5 // pred_region
      %s179 = ssub.s32 %s10, 1
      // Predicated region
      $region13: #{conv_generic.1} parent=11 // pred_check
        %p180 = pneg %p85
      $region14: #{conv_generic.1} parent=11 // pred_check_branch
        %182 = sbr.rel (%p180) target = $region16
      $region15: #{conv_generic.1} parent=11 // pred_region
        %s183 = smul.u32 4, %s22
        %p184 = scmp.lt.s32.totalorder %s183, 3
        %s185 = scalar_select %p184, %s183, 3
        %p186 = scmp.lt.s32.totalorder %s21, 0
        %s187 = scalar_select %p186, %s21, 0
        %s188 = sadd.s32 %s187, %s185
        %s189 = smul.addr %s188, 4
        %s190 = scalar_lea.vmem %s1, %s189
        %s191 = smul.u32 4, %s22
      $region16: #{conv_generic.1} parent=11 // pred_fallthru
        _
      // Predicated region
      $region17: #{conv_generic.1} parent=11 // pred_check
        %p192 = pneg %p111
      $region18: #{conv_generic.1} parent=11 // pred_check_branch
        %194 = sbr.rel (%p192) target = $region20
      $region19: #{conv_generic.1} parent=11 // pred_region
        %p195 = scmp.lt.s32.totalorder %s21, 0
        %s196 = scalar_select %p195, %s21, 0
        %s197 = scalar_lea.vmem %s2, %s196
      $region20: #{conv_generic.1} parent=11 // pred_fallthru
        _
      // Predicated region
      $region21: #{conv_generic.1} parent=11 // pred_check
        %p198 = pneg %p137
      $region22: #{conv_generic.1} parent=11 // pred_check_branch
        %200 = sbr.rel (%p198) target = $region24
      $region23: #{conv_generic.1} parent=11 // pred_region
        %p201 = scmp.lt.s32.totalorder %s21, 0
        %s202 = scalar_select %p201, %s21, 0
        %s203 = scalar_lea.vmem %s3, %s202
      $region24: #{conv_generic.1} parent=11 // pred_fallthru
        _
    $region12: #{conv_generic.1} parent=5 // pred_fallthru
      _
    %p204 = scmp.lt.s32.totalorder %s10, 32
    // Predicated region
    $region25: #{conv_generic.1} parent=5 // pred_check
      %p205 = pneg %p204
    $region26: #{conv_generic.1} parent=5 // pred_check_branch
      %207 = sbr.rel (%p205) target = $region28
    $region27: #{conv_generic.1} parent=5 // pred_region
      // Predicated region
      $region29: #{conv_generic.1} parent=27 // pred_check
        %p208 = pneg %p51
      $region30: #{conv_generic.1} parent=27 // pred_check_branch
        %210 = sbr.rel (%p208) target = $region32
      $region31: #{conv_generic.1} parent=27 // pred_region
        %s211 = smul.u32 64, %s17
        %p212 = scmp.lt.s32.totalorder %s211, 2047
        %s213 = scalar_select %p212, %s211, 2047
        %p214 = scmp.lt.s32.totalorder %s19, 0
        %s215 = scalar_select %p214, %s19, 0
        %s216 = sadd.s32 %s215, %s213
        %s217 = smul.addr %s216, 4
        %s218 = scalar_lea.vmem %s0, %s217
        %s219 = smul.u32 64, %s17
      $region32: #{conv_generic.1} parent=27 // pred_fallthru
        _
    $region28: #{conv_generic.1} parent=5 // pred_fallthru
      _
    %p220 = scmp.le.s32.totalorder 1, %s10
    %p221 = scmp.lt.s32.totalorder %s10, 33
    %p222 = pnand %p220, %p221
    %p223 = pneg %p222
    // Predicated region
    $region33: #{conv_generic.1} parent=5 // pred_check
      _
    $region34: #{conv_generic.1} parent=5 // pred_check_branch
      %225 = sbr.rel (%p222) target = $region36
    $region35: #{conv_generic.1} parent=5 // pred_region
      %s226 = ssub.s32 %s10, 1
      %s227 = smul.u32 64, %s20
      %p228 = scmp.lt.s32.totalorder %s227, 2047
      %s229 = scalar_select %p228, %s227, 2047
      %p230 = scmp.lt.s32.totalorder %s22, 0
      %s231 = scalar_select %p230, %s22, 0
      %s232 = sadd.s32 %s231, %s229
      %s233 = smul.addr %s232, 4
      %s234 = scalar_lea.vmem %s0, %s233
      %p235 = pneg %p57
      %p236 = pneg %p54
      %s237 = smul.u32 4, %s22
      %p238 = scmp.lt.s32.totalorder %s237, 3
      %s239 = scalar_select %p238, %s237, 3
      %p240 = scmp.lt.s32.totalorder %s21, 0
      %s241 = scalar_select %p240, %s21, 0
      %s242 = sadd.s32 %s241, %s239
      %s243 = smul.addr %s242, 4
      %s244 = scalar_lea.vmem %s1, %s243
      %p245 = pneg %p85
      %p246 = pneg %p82
      %p247 = scmp.lt.s32.totalorder %s21, 0
      %s248 = scalar_select %p247, %s21, 0
      %s249 = scalar_lea.vmem %s2, %s248
      %p250 = pneg %p111
      %p251 = pneg %p108
      %p252 = scmp.lt.s32.totalorder %s21, 0
      %s253 = scalar_select %p252, %s21, 0
      %s254 = scalar_lea.vmem %s3, %s253
      %p255 = pneg %p137
      %p256 = pneg %p134
      %p257 = pneg %p165
      %p258 = pneg %p162
      %s259 = smul.u32 64, %s20
      %p260 = scmp.lt.s32.totalorder %s259, 2047
      %s261 = scalar_select %p260, %s259, 2047
      %p262 = scmp.lt.s32.totalorder %s21, 0
      %s263 = scalar_select %p262, %s21, 0
      %s264 = sadd.s32 %s263, %s261
      %s265 = smul.addr %s264, 4
      %s266 = scalar_lea.vmem %s4, %s265
      %s267 = smul.u32 64, %s20
      %p268 = scmp.lt.s32.totalorder %s267, 2047
      %s269 = scalar_select %p268, %s267, 2047
      %p270 = scmp.lt.s32.totalorder %s22, 0
      %s271 = scalar_select %p270, %s22, 0
      %s272 = sadd.s32 %s271, %s269
      %s273 = smul.addr %s272, 4
      %s274 = scalar_lea.vmem %s0, %s273
      %s275 = smul.u32 64, %s20
      %s276 = smul.u32 4, %s22
      %p277 = scmp.lt.s32.totalorder %s276, 3
      %s278 = scalar_select %p277, %s276, 3
      %p279 = scmp.lt.s32.totalorder %s21, 0
      %s280 = scalar_select %p279, %s21, 0
      %s281 = sadd.s32 %s280, %s278
      %s282 = smul.addr %s281, 4
      %s283 = scalar_lea.vmem %s1, %s282
      %s284 = smul.u32 4, %s22
      %p285 = scmp.lt.s32.totalorder %s21, 0
      %s286 = scalar_select %p285, %s21, 0
      %s287 = scalar_lea.vmem %s2, %s286
      %p288 = scmp.lt.s32.totalorder %s21, 0
      %s289 = scalar_select %p288, %s21, 0
      %s290 = scalar_lea.vmem %s3, %s289
      %s291 = smul.u32 64, %s20
      %p292 = scmp.lt.s32.totalorder %s291, 2047
      %s293 = scalar_select %p292, %s291, 2047
      %p294 = scmp.lt.s32.totalorder %s21, 0
      %s295 = scalar_select %p294, %s21, 0
      %s296 = sadd.s32 %s295, %s293
      %s297 = smul.addr %s296, 4
      %s298 = scalar_lea.vmem %s4, %s297
      %s299 = smul.u32 64, %s20
      %p301 = scmp.eq.s32.totalorder %s22, 0
      // Predicated region
      $region37: #{conv_generic.1} parent=35 // pred_check
        %p302 = pneg %p301
      $region38: #{conv_generic.1} parent=35 // pred_check_branch
        %304 = sbr.rel (%p302) target = $region40
      $region39: #{conv_generic.1} parent=35 // pred_region
        %vm305 = vcmask 523264
        %306 = vst.msk [vmem:[#allocation2] sm:$0xff] %vm305, 0.0
        %307 = vst.msk [vmem:[#allocation2 + $0x8] sm:$0xff] %vm305, 0.0
        %308 = vst.msk [vmem:[#allocation2 + $0x10] sm:$0xff] %vm305, 0.0
        %309 = vst.msk [vmem:[#allocation2 + $0x18] sm:$0xff] %vm305, 0.0
        %310 = vst.msk [vmem:[#allocation2 + $0x20] sm:$0xff] %vm305, 0.0
        %311 = vst.msk [vmem:[#allocation2 + $0x28] sm:$0xff] %vm305, 0.0
        %312 = vst.msk [vmem:[#allocation2 + $0x30] sm:$0xff] %vm305, 0.0
        %313 = vst.msk [vmem:[#allocation2 + $0x38] sm:$0xff] %vm305, 0.0
        %314 = vst.msk [vmem:[#allocation2 + $0x40] sm:$0xff] %vm305, 0.0
        %315 = vst.msk [vmem:[#allocation2 + $0x48] sm:$0xff] %vm305, 0.0
        %316 = vst.msk [vmem:[#allocation2 + $0x50] sm:$0xff] %vm305, 0.0
        %317 = vst.msk [vmem:[#allocation2 + $0x58] sm:$0xff] %vm305, 0.0
        %318 = vst.msk [vmem:[#allocation2 + $0x60] sm:$0xff] %vm305, 0.0
        %319 = vst.msk [vmem:[#allocation2 + $0x68] sm:$0xff] %vm305, 0.0
        %320 = vst.msk [vmem:[#allocation2 + $0x70] sm:$0xff] %vm305, 0.0
        %321 = vst.msk [vmem:[#allocation2 + $0x78] sm:$0xff] %vm305, 0.0
        %322 = vst.msk [vmem:[#allocation2 + $0x80] sm:$0xff] %vm305, 0.0
        %323 = vst.msk [vmem:[#allocation2 + $0x88] sm:$0xff] %vm305, 0.0
        %324 = vst.msk [vmem:[#allocation2 + $0x90] sm:$0xff] %vm305, 0.0
        %325 = vst.msk [vmem:[#allocation2 + $0x98] sm:$0xff] %vm305, 0.0
        %326 = vst.msk [vmem:[#allocation2 + $0xa0] sm:$0xff] %vm305, 0.0
        %327 = vst.msk [vmem:[#allocation2 + $0xa8] sm:$0xff] %vm305, 0.0
        %328 = vst.msk [vmem:[#allocation2 + $0xb0] sm:$0xff] %vm305, 0.0
        %329 = vst.msk [vmem:[#allocation2 + $0xb8] sm:$0xff] %vm305, 0.0
        %330 = vst.msk [vmem:[#allocation2 + $0xc0] sm:$0xff] %vm305, 0.0
        %331 = vst.msk [vmem:[#allocation2 + $0xc8] sm:$0xff] %vm305, 0.0
        %332 = vst.msk [vmem:[#allocation2 + $0xd0] sm:$0xff] %vm305, 0.0
        %333 = vst.msk [vmem:[#allocation2 + $0xd8] sm:$0xff] %vm305, 0.0
        %334 = vst.msk [vmem:[#allocation2 + $0xe0] sm:$0xff] %vm305, 0.0
        %335 = vst.msk [vmem:[#allocation2 + $0xe8] sm:$0xff] %vm305, 0.0
        %336 = vst.msk [vmem:[#allocation2 + $0xf0] sm:$0xff] %vm305, 0.0
        %337 = vst.msk [vmem:[#allocation2 + $0xf8] sm:$0xff] %vm305, 0.0
        %338 = vst.msk [vmem:[#allocation2 + $0x100] sm:$0xff] %vm305, 0.0
        %339 = vst.msk [vmem:[#allocation2 + $0x108] sm:$0xff] %vm305, 0.0
        %340 = vst.msk [vmem:[#allocation2 + $0x110] sm:$0xff] %vm305, 0.0
        %341 = vst.msk [vmem:[#allocation2 + $0x118] sm:$0xff] %vm305, 0.0
        %342 = vst.msk [vmem:[#allocation2 + $0x120] sm:$0xff] %vm305, 0.0
        %343 = vst.msk [vmem:[#allocation2 + $0x128] sm:$0xff] %vm305, 0.0
        %344 = vst.msk [vmem:[#allocation2 + $0x130] sm:$0xff] %vm305, 0.0
        %345 = vst.msk [vmem:[#allocation2 + $0x138] sm:$0xff] %vm305, 0.0
        %346 = vst.msk [vmem:[#allocation2 + $0x140] sm:$0xff] %vm305, 0.0
        %347 = vst.msk [vmem:[#allocation2 + $0x148] sm:$0xff] %vm305, 0.0
        %348 = vst.msk [vmem:[#allocation2 + $0x150] sm:$0xff] %vm305, 0.0
        %349 = vst.msk [vmem:[#allocation2 + $0x158] sm:$0xff] %vm305, 0.0
        %350 = vst.msk [vmem:[#allocation2 + $0x160] sm:$0xff] %vm305, 0.0
        %351 = vst.msk [vmem:[#allocation2 + $0x168] sm:$0xff] %vm305, 0.0
        %352 = vst.msk [vmem:[#allocation2 + $0x170] sm:$0xff] %vm305, 0.0
        %353 = vst.msk [vmem:[#allocation2 + $0x178] sm:$0xff] %vm305, 0.0
        %354 = vst.msk [vmem:[#allocation2 + $0x180] sm:$0xff] %vm305, 0.0
        %355 = vst.msk [vmem:[#allocation2 + $0x188] sm:$0xff] %vm305, 0.0
        %356 = vst.msk [vmem:[#allocation2 + $0x190] sm:$0xff] %vm305, 0.0
        %357 = vst.msk [vmem:[#allocation2 + $0x198] sm:$0xff] %vm305, 0.0
        %358 = vst.msk [vmem:[#allocation2 + $0x1a0] sm:$0xff] %vm305, 0.0
        %359 = vst.msk [vmem:[#allocation2 + $0x1a8] sm:$0xff] %vm305, 0.0
        %360 = vst.msk [vmem:[#allocation2 + $0x1b0] sm:$0xff] %vm305, 0.0
        %361 = vst.msk [vmem:[#allocation2 + $0x1b8] sm:$0xff] %vm305, 0.0
        %362 = vst.msk [vmem:[#allocation2 + $0x1c0] sm:$0xff] %vm305, 0.0
        %363 = vst.msk [vmem:[#allocation2 + $0x1c8] sm:$0xff] %vm305, 0.0
        %364 = vst.msk [vmem:[#allocation2 + $0x1d0] sm:$0xff] %vm305, 0.0
        %365 = vst.msk [vmem:[#allocation2 + $0x1d8] sm:$0xff] %vm305, 0.0
        %366 = vst.msk [vmem:[#allocation2 + $0x1e0] sm:$0xff] %vm305, 0.0
        %367 = vst.msk [vmem:[#allocation2 + $0x1e8] sm:$0xff] %vm305, 0.0
        %368 = vst.msk [vmem:[#allocation2 + $0x1f0] sm:$0xff] %vm305, 0.0
        %369 = vst.msk [vmem:[#allocation2 + $0x1f8] sm:$0xff] %vm305, 0.0
      $region40: #{conv_generic.1} parent=35 // pred_fallthru
        _
      %v370 = vld [vmem:[#allocation2] sm:$0xff]
      %v371 = vld [vmem:[#allocation2 + $0x8] sm:$0xff]
      %v372 = vld [vmem:[#allocation2 + $0x10] sm:$0xff]
      %v373 = vld [vmem:[#allocation2 + $0x18] sm:$0xff]
      %v374 = vld [vmem:[#allocation2 + $0x20] sm:$0xff]
      %v375 = vld [vmem:[#allocation2 + $0x28] sm:$0xff]
      %v376 = vld [vmem:[#allocation2 + $0x30] sm:$0xff]
      %v377 = vld [vmem:[#allocation2 + $0x38] sm:$0xff]
      %v378 = vld [vmem:[#allocation2 + $0x40] sm:$0xff]
      %v379 = vld [vmem:[#allocation2 + $0x48] sm:$0xff]
      %v380 = vld [vmem:[#allocation2 + $0x50] sm:$0xff]
      %v381 = vld [vmem:[#allocation2 + $0x58] sm:$0xff]
      %v382 = vld [vmem:[#allocation2 + $0x60] sm:$0xff]
      %v383 = vld [vmem:[#allocation2 + $0x68] sm:$0xff]
      %v384 = vld [vmem:[#allocation2 + $0x70] sm:$0xff]
      %v385 = vld [vmem:[#allocation2 + $0x78] sm:$0xff]
      %v386 = vld [vmem:[#allocation2 + $0x80] sm:$0xff]
      %v387 = vld [vmem:[#allocation2 + $0x88] sm:$0xff]
      %v388 = vld [vmem:[#allocation2 + $0x90] sm:$0xff]
      %v389 = vld [vmem:[#allocation2 + $0x98] sm:$0xff]
      %v390 = vld [vmem:[#allocation2 + $0xa0] sm:$0xff]
      %v391 = vld [vmem:[#allocation2 + $0xa8] sm:$0xff]
      %v392 = vld [vmem:[#allocation2 + $0xb0] sm:$0xff]
      %v393 = vld [vmem:[#allocation2 + $0xb8] sm:$0xff]
      %v394 = vld [vmem:[#allocation2 + $0xc0] sm:$0xff]
      %v395 = vld [vmem:[#allocation2 + $0xc8] sm:$0xff]
      %v396 = vld [vmem:[#allocation2 + $0xd0] sm:$0xff]
      %v397 = vld [vmem:[#allocation2 + $0xd8] sm:$0xff]
      %v398 = vld [vmem:[#allocation2 + $0xe0] sm:$0xff]
      %v399 = vld [vmem:[#allocation2 + $0xe8] sm:$0xff]
      %v400 = vld [vmem:[#allocation2 + $0xf0] sm:$0xff]
      %v401 = vld [vmem:[#allocation2 + $0xf8] sm:$0xff]
      %v402 = vld [vmem:[#allocation2 + $0x100] sm:$0xff]
      %v403 = vld [vmem:[#allocation2 + $0x108] sm:$0xff]
      %v404 = vld [vmem:[#allocation2 + $0x110] sm:$0xff]
      %v405 = vld [vmem:[#allocation2 + $0x118] sm:$0xff]
      %v406 = vld [vmem:[#allocation2 + $0x120] sm:$0xff]
      %v407 = vld [vmem:[#allocation2 + $0x128] sm:$0xff]
      %v408 = vld [vmem:[#allocation2 + $0x130] sm:$0xff]
      %v409 = vld [vmem:[#allocation2 + $0x138] sm:$0xff]
      %v410 = vld [vmem:[#allocation2 + $0x140] sm:$0xff]
      %v411 = vld [vmem:[#allocation2 + $0x148] sm:$0xff]
      %v412 = vld [vmem:[#allocation2 + $0x150] sm:$0xff]
      %v413 = vld [vmem:[#allocation2 + $0x158] sm:$0xff]
      %v414 = vld [vmem:[#allocation2 + $0x160] sm:$0xff]
      %v415 = vld [vmem:[#allocation2 + $0x168] sm:$0xff]
      %v416 = vld [vmem:[#allocation2 + $0x170] sm:$0xff]
      %v417 = vld [vmem:[#allocation2 + $0x178] sm:$0xff]
      %v418 = vld [vmem:[#allocation2 + $0x180] sm:$0xff]
      %v419 = vld [vmem:[#allocation2 + $0x188] sm:$0xff]
      %v420 = vld [vmem:[#allocation2 + $0x190] sm:$0xff]
      %v421 = vld [vmem:[#allocation2 + $0x198] sm:$0xff]
      %v422 = vld [vmem:[#allocation2 + $0x1a0] sm:$0xff]
      %v423 = vld [vmem:[#allocation2 + $0x1a8] sm:$0xff]
      %v424 = vld [vmem:[#allocation2 + $0x1b0] sm:$0xff]
      %v425 = vld [vmem:[#allocation2 + $0x1b8] sm:$0xff]
      %v426 = vld [vmem:[#allocation2 + $0x1c0] sm:$0xff]
      %v427 = vld [vmem:[#allocation2 + $0x1c8] sm:$0xff]
      %v428 = vld [vmem:[#allocation2 + $0x1d0] sm:$0xff]
      %v429 = vld [vmem:[#allocation2 + $0x1d8] sm:$0xff]
      %v430 = vld [vmem:[#allocation2 + $0x1e0] sm:$0xff]
      %v431 = vld [vmem:[#allocation2 + $0x1e8] sm:$0xff]
      %v432 = vld [vmem:[#allocation2 + $0x1f0] sm:$0xff]
      %v433 = vld [vmem:[#allocation2 + $0x1f8] sm:$0xff]
      %v434 = vld [vmem:[%s274] sm:$0xf]
      %v435 = vld [vmem:[%s274 + $0x4] sm:$0xf]
      %v436 = vld [vmem:[%s274 + $0x8] sm:$0xf]
      %v437 = vld [vmem:[%s274 + $0xc] sm:$0xf]
      %v438 = vld [vmem:[%s274 + $0x10] sm:$0xf]
      %v439 = vld [vmem:[%s274 + $0x14] sm:$0xf]
      %v440 = vld [vmem:[%s274 + $0x18] sm:$0xf]
      %v441 = vld [vmem:[%s274 + $0x1c] sm:$0xf]
      %v442 = vld [vmem:[%s274 + $0x20] sm:$0xf]
      %v443 = vld [vmem:[%s274 + $0x24] sm:$0xf]
      %v444 = vld [vmem:[%s274 + $0x28] sm:$0xf]
      %v445 = vld [vmem:[%s274 + $0x2c] sm:$0xf]
      %v446 = vld [vmem:[%s274 + $0x30] sm:$0xf]
      %v447 = vld [vmem:[%s274 + $0x34] sm:$0xf]
      %v448 = vld [vmem:[%s274 + $0x38] sm:$0xf]
      %v449 = vld [vmem:[%s274 + $0x3c] sm:$0xf]
      %v450 = vld [vmem:[%s274 + $0x40] sm:$0xf]
      %v451 = vld [vmem:[%s274 + $0x44] sm:$0xf]
      %v452 = vld [vmem:[%s274 + $0x48] sm:$0xf]
      %v453 = vld [vmem:[%s274 + $0x4c] sm:$0xf]
      %v454 = vld [vmem:[%s274 + $0x50] sm:$0xf]
      %v455 = vld [vmem:[%s274 + $0x54] sm:$0xf]
      %v456 = vld [vmem:[%s274 + $0x58] sm:$0xf]
      %v457 = vld [vmem:[%s274 + $0x5c] sm:$0xf]
      %v458 = vld [vmem:[%s274 + $0x60] sm:$0xf]
      %v459 = vld [vmem:[%s274 + $0x64] sm:$0xf]
      %v460 = vld [vmem:[%s274 + $0x68] sm:$0xf]
      %v461 = vld [vmem:[%s274 + $0x6c] sm:$0xf]
      %v462 = vld [vmem:[%s274 + $0x70] sm:$0xf]
      %v463 = vld [vmem:[%s274 + $0x74] sm:$0xf]
      %v464 = vld [vmem:[%s274 + $0x78] sm:$0xf]
      %v465 = vld [vmem:[%s274 + $0x7c] sm:$0xf]
      %v466 = vld [vmem:[%s274 + $0x80] sm:$0xf]
      %v467 = vld [vmem:[%s274 + $0x84] sm:$0xf]
      %v468 = vld [vmem:[%s274 + $0x88] sm:$0xf]
      %v469 = vld [vmem:[%s274 + $0x8c] sm:$0xf]
      %v470 = vld [vmem:[%s274 + $0x90] sm:$0xf]
      %v471 = vld [vmem:[%s274 + $0x94] sm:$0xf]
      %v472 = vld [vmem:[%s274 + $0x98] sm:$0xf]
      %v473 = vld [vmem:[%s274 + $0x9c] sm:$0xf]
      %v474 = vld [vmem:[%s274 + $0xa0] sm:$0xf]
      %v475 = vld [vmem:[%s274 + $0xa4] sm:$0xf]
      %v476 = vld [vmem:[%s274 + $0xa8] sm:$0xf]
      %v477 = vld [vmem:[%s274 + $0xac] sm:$0xf]
      %v478 = vld [vmem:[%s274 + $0xb0] sm:$0xf]
      %v479 = vld [vmem:[%s274 + $0xb4] sm:$0xf]
      %v480 = vld [vmem:[%s274 + $0xb8] sm:$0xf]
      %v481 = vld [vmem:[%s274 + $0xbc] sm:$0xf]
      %v482 = vld [vmem:[%s274 + $0xc0] sm:$0xf]
      %v483 = vld [vmem:[%s274 + $0xc4] sm:$0xf]
      %v484 = vld [vmem:[%s274 + $0xc8] sm:$0xf]
      %v485 = vld [vmem:[%s274 + $0xcc] sm:$0xf]
      %v486 = vld [vmem:[%s274 + $0xd0] sm:$0xf]
      %v487 = vld [vmem:[%s274 + $0xd4] sm:$0xf]
      %v488 = vld [vmem:[%s274 + $0xd8] sm:$0xf]
      %v489 = vld [vmem:[%s274 + $0xdc] sm:$0xf]
      %v490 = vld [vmem:[%s274 + $0xe0] sm:$0xf]
      %v491 = vld [vmem:[%s274 + $0xe4] sm:$0xf]
      %v492 = vld [vmem:[%s274 + $0xe8] sm:$0xf]
      %v493 = vld [vmem:[%s274 + $0xec] sm:$0xf]
      %v494 = vld [vmem:[%s274 + $0xf0] sm:$0xf]
      %v495 = vld [vmem:[%s274 + $0xf4] sm:$0xf]
      %v496 = vld [vmem:[%s274 + $0xf8] sm:$0xf]
      %v497 = vld [vmem:[%s274 + $0xfc] sm:$0xf]
      %v498 = vld [vmem:[%s283] sm:$0xf]
      %v499 = vld [vmem:[%s283 + $0x4] sm:$0xf]
      %v500 = vld [vmem:[%s283 + $0x8] sm:$0xf]
      %v501 = vld [vmem:[%s283 + $0xc] sm:$0x3]
      %v566 = vunpack.c.l.b16 %v434
      %v567 = vunpack.c.l.b16 %v435
      %v568 = vunpack.c.l.b16 %v436
      %v569 = vunpack.c.l.b16 %v437
      %v570 = vunpack.c.l.b16 %v438
      %v571 = vunpack.c.l.b16 %v439
      %v572 = vunpack.c.l.b16 %v440
      %v573 = vunpack.c.l.b16 %v441
      %v574 = vunpack.c.l.b16 %v442
      %v575 = vunpack.c.l.b16 %v443
      %v576 = vunpack.c.l.b16 %v444
      %v577 = vunpack.c.l.b16 %v445
      %v578 = vunpack.c.l.b16 %v446
      %v579 = vunpack.c.l.b16 %v447
      %v580 = vunpack.c.l.b16 %v448
      %v581 = vunpack.c.l.b16 %v449
      %v582 = vunpack.c.l.b16 %v450
      %v583 = vunpack.c.l.b16 %v451
      %v584 = vunpack.c.l.b16 %v452
      %v585 = vunpack.c.l.b16 %v453
      %v586 = vunpack.c.l.b16 %v454
      %v587 = vunpack.c.l.b16 %v455
      %v588 = vunpack.c.l.b16 %v456
      %v589 = vunpack.c.l.b16 %v457
      %v590 = vunpack.c.l.b16 %v458
      %v591 = vunpack.c.l.b16 %v459
      %v592 = vunpack.c.l.b16 %v460
      %v593 = vunpack.c.l.b16 %v461
      %v594 = vunpack.c.l.b16 %v462
      %v595 = vunpack.c.l.b16 %v463
      %v596 = vunpack.c.l.b16 %v464
      %v597 = vunpack.c.l.b16 %v465
      %v598 = vunpack.c.l.b16 %v466
      %v599 = vunpack.c.l.b16 %v467
      %v600 = vunpack.c.l.b16 %v468
      %v601 = vunpack.c.l.b16 %v469
      %v602 = vunpack.c.l.b16 %v470
      %v603 = vunpack.c.l.b16 %v471
      %v604 = vunpack.c.l.b16 %v472
      %v605 = vunpack.c.l.b16 %v473
      %v606 = vunpack.c.l.b16 %v474
      %v607 = vunpack.c.l.b16 %v475
      %v608 = vunpack.c.l.b16 %v476
      %v609 = vunpack.c.l.b16 %v477
      %v610 = vunpack.c.l.b16 %v478
      %v611 = vunpack.c.l.b16 %v479
      %v612 = vunpack.c.l.b16 %v480
      %v613 = vunpack.c.l.b16 %v481
      %v614 = vunpack.c.l.b16 %v482
      %v615 = vunpack.c.l.b16 %v483
      %v616 = vunpack.c.l.b16 %v484
      %v617 = vunpack.c.l.b16 %v485
      %v618 = vunpack.c.l.b16 %v486
      %v619 = vunpack.c.l.b16 %v487
      %v620 = vunpack.c.l.b16 %v488
      %v621 = vunpack.c.l.b16 %v489
      %v622 = vunpack.c.l.b16 %v490
      %v623 = vunpack.c.l.b16 %v491
      %v624 = vunpack.c.l.b16 %v492
      %v625 = vunpack.c.l.b16 %v493
      %v626 = vunpack.c.l.b16 %v494
      %v627 = vunpack.c.l.b16 %v495
      %v628 = vunpack.c.l.b16 %v496
      %v629 = vunpack.c.l.b16 %v497
      %v630 = vpack.c.b16 %v567, %v566
      %v631 = vpack.c.b16 %v569, %v568
      %v632 = vpack.c.b16 %v571, %v570
      %v633 = vpack.c.b16 %v573, %v572
      %v634 = vpack.c.b16 %v575, %v574
      %v635 = vpack.c.b16 %v577, %v576
      %v636 = vpack.c.b16 %v579, %v578
      %v637 = vpack.c.b16 %v581, %v580
      %v638 = vpack.c.b16 %v583, %v582
      %v639 = vpack.c.b16 %v585, %v584
      %v640 = vpack.c.b16 %v587, %v586
      %v641 = vpack.c.b16 %v589, %v588
      %v642 = vpack.c.b16 %v591, %v590
      %v643 = vpack.c.b16 %v593, %v592
      %v644 = vpack.c.b16 %v595, %v594
      %v645 = vpack.c.b16 %v597, %v596
      %v646 = vpack.c.b16 %v599, %v598
      %v647 = vpack.c.b16 %v601, %v600
      %v648 = vpack.c.b16 %v603, %v602
      %v649 = vpack.c.b16 %v605, %v604
      %v650 = vpack.c.b16 %v607, %v606
      %v651 = vpack.c.b16 %v609, %v608
      %v652 = vpack.c.b16 %v611, %v610
      %v653 = vpack.c.b16 %v613, %v612
      %v654 = vpack.c.b16 %v615, %v614
      %v655 = vpack.c.b16 %v617, %v616
      %v656 = vpack.c.b16 %v619, %v618
      %v657 = vpack.c.b16 %v621, %v620
      %v658 = vpack.c.b16 %v623, %v622
      %v659 = vpack.c.b16 %v625, %v624
      %v660 = vpack.c.b16 %v627, %v626
      %v661 = vpack.c.b16 %v629, %v628
      %v666 = vunpack.c.l.b16 %v498
      %v667 = vunpack.c.l.b16 %v499
      %v668 = vunpack.c.l.b16 %v500
      %v669 = vunpack.c.l.b16 %v501
      %v670 = vpack.c.b16 %v667, %v666
      %v671 = vpack.c.b16 %v669, %v668
      %vm673 = vcmask 220160
      %v675 = vsel %vm673, %v630, 0
      %v678 = vsel %vm673, %v631, 0
      %v681 = vsel %vm673, %v632, 0
      %v684 = vsel %vm673, %v633, 0
      %v687 = vsel %vm673, %v634, 0
      %v690 = vsel %vm673, %v635, 0
      %v693 = vsel %vm673, %v636, 0
      %v696 = vsel %vm673, %v637, 0
      %v699 = vsel %vm673, %v638, 0
      %v702 = vsel %vm673, %v639, 0
      %v705 = vsel %vm673, %v640, 0
      %v708 = vsel %vm673, %v641, 0
      %v711 = vsel %vm673, %v642, 0
      %v714 = vsel %vm673, %v643, 0
      %v717 = vsel %vm673, %v644, 0
      %v720 = vsel %vm673, %v645, 0
      %v723 = vsel %vm673, %v646, 0
      %v726 = vsel %vm673, %v647, 0
      %v729 = vsel %vm673, %v648, 0
      %v732 = vsel %vm673, %v649, 0
      %v735 = vsel %vm673, %v650, 0
      %v738 = vsel %vm673, %v651, 0
      %v741 = vsel %vm673, %v652, 0
      %v744 = vsel %vm673, %v653, 0
      %v747 = vsel %vm673, %v654, 0
      %v750 = vsel %vm673, %v655, 0
      %v753 = vsel %vm673, %v656, 0
      %v756 = vsel %vm673, %v657, 0
      %v759 = vsel %vm673, %v658, 0
      %v762 = vsel %vm673, %v659, 0
      %v765 = vsel %vm673, %v660, 0
      %v768 = vsel %vm673, %v661, 0
      %vm770 = vcmask 1044480
      %vm771 = vcmask 1045504
      %v772 = vsel %vm770, 4294967295, 65535
      %v773 = vsel %vm771, %v772, 0
      %v775 = vand.u32 %v671, %v773
      %777 = vmatpush.bf16.msra.mxu0 0
      %778 = vmatpush.bf16.msra.mxu0 0
      %779 = vmatpush.bf16.msra.mxu0 0
      %780 = vmatpush.bf16.msra.mxu0 0
      %781 = vmatpush.bf16.msra.mxu0 0
      %782 = vmatpush.bf16.msra.mxu0 0
      %783 = vmatpush.bf16.msra.mxu0 %v775
      %784 = vmatpush.bf16.msra.mxu0 %v670
      %785 = vmatmul.bf16.gmra.mxu0 %v675
      %v786 = vpop.f32.mrf.mxu0
      %v787 = vadd.f32 0.0, %v786
      %v788 = vpop.f32.mrf.mxu0
      %v789 = vadd.f32 0.0, %v788
      %790 = vmatmul.bf16.gmra.mxu0 %v678
      %v791 = vpop.f32.mrf.mxu0
      %v792 = vadd.f32 0.0, %v791
      %v793 = vpop.f32.mrf.mxu0
      %v794 = vadd.f32 0.0, %v793
      %795 = vmatmul.bf16.gmra.mxu0 %v681
      %v796 = vpop.f32.mrf.mxu0
      %v797 = vadd.f32 0.0, %v796
      %v798 = vpop.f32.mrf.mxu0
      %v799 = vadd.f32 0.0, %v798
      %800 = vmatmul.bf16.gmra.mxu0 %v684
      %v801 = vpop.f32.mrf.mxu0
      %v802 = vadd.f32 0.0, %v801
      %v803 = vpop.f32.mrf.mxu0
      %v804 = vadd.f32 0.0, %v803
      %805 = vmatmul.bf16.gmra.mxu0 %v687
      %v806 = vpop.f32.mrf.mxu0
      %v807 = vadd.f32 0.0, %v806
      %v808 = vpop.f32.mrf.mxu0
      %v809 = vadd.f32 0.0, %v808
      %810 = vmatmul.bf16.gmra.mxu0 %v690
      %v811 = vpop.f32.mrf.mxu0
      %v812 = vadd.f32 0.0, %v811
      %v813 = vpop.f32.mrf.mxu0
      %v814 = vadd.f32 0.0, %v813
      %815 = vmatmul.bf16.gmra.mxu0 %v693
      %v816 = vpop.f32.mrf.mxu0
      %v817 = vadd.f32 0.0, %v816
      %v818 = vpop.f32.mrf.mxu0
      %v819 = vadd.f32 0.0, %v818
      %820 = vmatmul.bf16.gmra.mxu0 %v696
      %v821 = vpop.f32.mrf.mxu0
      %v822 = vadd.f32 0.0, %v821
      %v823 = vpop.f32.mrf.mxu0
      %v824 = vadd.f32 0.0, %v823
      %825 = vmatmul.bf16.gmra.mxu0 %v699
      %v826 = vpop.f32.mrf.mxu0
      %v827 = vadd.f32 0.0, %v826
      %v828 = vpop.f32.mrf.mxu0
      %v829 = vadd.f32 0.0, %v828
      %830 = vmatmul.bf16.gmra.mxu0 %v702
      %v831 = vpop.f32.mrf.mxu0
      %v832 = vadd.f32 0.0, %v831
      %v833 = vpop.f32.mrf.mxu0
      %v834 = vadd.f32 0.0, %v833
      %835 = vmatmul.bf16.gmra.mxu0 %v705
      %v836 = vpop.f32.mrf.mxu0
      %v837 = vadd.f32 0.0, %v836
      %v838 = vpop.f32.mrf.mxu0
      %v839 = vadd.f32 0.0, %v838
      %840 = vmatmul.bf16.gmra.mxu0 %v708
      %v841 = vpop.f32.mrf.mxu0
      %v842 = vadd.f32 0.0, %v841
      %v843 = vpop.f32.mrf.mxu0
      %v844 = vadd.f32 0.0, %v843
      %845 = vmatmul.bf16.gmra.mxu0 %v711
      %v846 = vpop.f32.mrf.mxu0
      %v847 = vadd.f32 0.0, %v846
      %v848 = vpop.f32.mrf.mxu0
      %v849 = vadd.f32 0.0, %v848
      %850 = vmatmul.bf16.gmra.mxu0 %v714
      %v851 = vpop.f32.mrf.mxu0
      %v852 = vadd.f32 0.0, %v851
      %v853 = vpop.f32.mrf.mxu0
      %v854 = vadd.f32 0.0, %v853
      %855 = vmatmul.bf16.gmra.mxu0 %v717
      %v856 = vpop.f32.mrf.mxu0
      %v857 = vadd.f32 0.0, %v856
      %v858 = vpop.f32.mrf.mxu0
      %v859 = vadd.f32 0.0, %v858
      %860 = vmatmul.bf16.gmra.mxu0 %v720
      %v861 = vpop.f32.mrf.mxu0
      %v862 = vadd.f32 0.0, %v861
      %v863 = vpop.f32.mrf.mxu0
      %v864 = vadd.f32 0.0, %v863
      %865 = vmatmul.bf16.gmra.mxu0 %v723
      %v866 = vpop.f32.mrf.mxu0
      %v867 = vadd.f32 0.0, %v866
      %v868 = vpop.f32.mrf.mxu0
      %v869 = vadd.f32 0.0, %v868
      %870 = vmatmul.bf16.gmra.mxu0 %v726
      %v871 = vpop.f32.mrf.mxu0
      %v872 = vadd.f32 0.0, %v871
      %v873 = vpop.f32.mrf.mxu0
      %v874 = vadd.f32 0.0, %v873
      %875 = vmatmul.bf16.gmra.mxu0 %v729
      %v876 = vpop.f32.mrf.mxu0
      %v877 = vadd.f32 0.0, %v876
      %v878 = vpop.f32.mrf.mxu0
      %v879 = vadd.f32 0.0, %v878
      %880 = vmatmul.bf16.gmra.mxu0 %v732
      %v881 = vpop.f32.mrf.mxu0
      %v882 = vadd.f32 0.0, %v881
      %v883 = vpop.f32.mrf.mxu0
      %v884 = vadd.f32 0.0, %v883
      %885 = vmatmul.bf16.gmra.mxu0 %v735
      %v886 = vpop.f32.mrf.mxu0
      %v887 = vadd.f32 0.0, %v886
      %v888 = vpop.f32.mrf.mxu0
      %v889 = vadd.f32 0.0, %v888
      %890 = vmatmul.bf16.gmra.mxu0 %v738
      %v891 = vpop.f32.mrf.mxu0
      %v892 = vadd.f32 0.0, %v891
      %v893 = vpop.f32.mrf.mxu0
      %v894 = vadd.f32 0.0, %v893
      %895 = vmatmul.bf16.gmra.mxu0 %v741
      %v896 = vpop.f32.mrf.mxu0
      %v897 = vadd.f32 0.0, %v896
      %v898 = vpop.f32.mrf.mxu0
      %v899 = vadd.f32 0.0, %v898
      %900 = vmatmul.bf16.gmra.mxu0 %v744
      %v901 = vpop.f32.mrf.mxu0
      %v902 = vadd.f32 0.0, %v901
      %v903 = vpop.f32.mrf.mxu0
      %v904 = vadd.f32 0.0, %v903
      %905 = vmatmul.bf16.gmra.mxu0 %v747
      %v906 = vpop.f32.mrf.mxu0
      %v907 = vadd.f32 0.0, %v906
      %v908 = vpop.f32.mrf.mxu0
      %v909 = vadd.f32 0.0, %v908
      %910 = vmatmul.bf16.gmra.mxu0 %v750
      %v911 = vpop.f32.mrf.mxu0
      %v912 = vadd.f32 0.0, %v911
      %v913 = vpop.f32.mrf.mxu0
      %v914 = vadd.f32 0.0, %v913
      %915 = vmatmul.bf16.gmra.mxu0 %v753
      %v916 = vpop.f32.mrf.mxu0
      %v917 = vadd.f32 0.0, %v916
      %v918 = vpop.f32.mrf.mxu0
      %v919 = vadd.f32 0.0, %v918
      %920 = vmatmul.bf16.gmra.mxu0 %v756
      %v921 = vpop.f32.mrf.mxu0
      %v922 = vadd.f32 0.0, %v921
      %v923 = vpop.f32.mrf.mxu0
      %v924 = vadd.f32 0.0, %v923
      %925 = vmatmul.bf16.gmra.mxu0 %v759
      %v926 = vpop.f32.mrf.mxu0
      %v927 = vadd.f32 0.0, %v926
      %v928 = vpop.f32.mrf.mxu0
      %v929 = vadd.f32 0.0, %v928
      %930 = vmatmul.bf16.gmra.mxu0 %v762
      %v931 = vpop.f32.mrf.mxu0
      %v932 = vadd.f32 0.0, %v931
      %v933 = vpop.f32.mrf.mxu0
      %v934 = vadd.f32 0.0, %v933
      %935 = vmatmul.bf16.gmra.mxu0 %v765
      %v936 = vpop.f32.mrf.mxu0
      %v937 = vadd.f32 0.0, %v936
      %v938 = vpop.f32.mrf.mxu0
      %v939 = vadd.f32 0.0, %v938
      %940 = vmatmul.bf16.gmra.mxu0 %v768
      %v941 = vpop.f32.mrf.mxu0
      %v942 = vadd.f32 0.0, %v941
      %v943 = vpop.f32.mrf.mxu0
      %v944 = vadd.f32 0.0, %v943
      %945 = vdwg.mxu0
      %v946 = vadd.f32 %v370, %v787
      %v947 = vadd.f32 %v371, %v789
      %v948 = vadd.f32 %v372, %v792
      %v949 = vadd.f32 %v373, %v794
      %v950 = vadd.f32 %v374, %v797
      %v951 = vadd.f32 %v375, %v799
      %v952 = vadd.f32 %v376, %v802
      %v953 = vadd.f32 %v377, %v804
      %v954 = vadd.f32 %v378, %v807
      %v955 = vadd.f32 %v379, %v809
      %v956 = vadd.f32 %v380, %v812
      %v957 = vadd.f32 %v381, %v814
      %v958 = vadd.f32 %v382, %v817
      %v959 = vadd.f32 %v383, %v819
      %v960 = vadd.f32 %v384, %v822
      %v961 = vadd.f32 %v385, %v824
      %v962 = vadd.f32 %v386, %v827
      %v963 = vadd.f32 %v387, %v829
      %v964 = vadd.f32 %v388, %v832
      %v965 = vadd.f32 %v389, %v834
      %v966 = vadd.f32 %v390, %v837
      %v967 = vadd.f32 %v391, %v839
      %v968 = vadd.f32 %v392, %v842
      %v969 = vadd.f32 %v393, %v844
      %v970 = vadd.f32 %v394, %v847
      %v971 = vadd.f32 %v395, %v849
      %v972 = vadd.f32 %v396, %v852
      %v973 = vadd.f32 %v397, %v854
      %v974 = vadd.f32 %v398, %v857
      %v975 = vadd.f32 %v399, %v859
      %v976 = vadd.f32 %v400, %v862
      %v977 = vadd.f32 %v401, %v864
      %v978 = vadd.f32 %v402, %v867
      %v979 = vadd.f32 %v403, %v869
      %v980 = vadd.f32 %v404, %v872
      %v981 = vadd.f32 %v405, %v874
      %v982 = vadd.f32 %v406, %v877
      %v983 = vadd.f32 %v407, %v879
      %v984 = vadd.f32 %v408, %v882
      %v985 = vadd.f32 %v409, %v884
      %v986 = vadd.f32 %v410, %v887
      %v987 = vadd.f32 %v411, %v889
      %v988 = vadd.f32 %v412, %v892
      %v989 = vadd.f32 %v413, %v894
      %v990 = vadd.f32 %v414, %v897
      %v991 = vadd.f32 %v415, %v899
      %v992 = vadd.f32 %v416, %v902
      %v993 = vadd.f32 %v417, %v904
      %v994 = vadd.f32 %v418, %v907
      %v995 = vadd.f32 %v419, %v909
      %v996 = vadd.f32 %v420, %v912
      %v997 = vadd.f32 %v421, %v914
      %v998 = vadd.f32 %v422, %v917
      %v999 = vadd.f32 %v423, %v919
      %v1000 = vadd.f32 %v424, %v922
      %v1001 = vadd.f32 %v425, %v924
      %v1002 = vadd.f32 %v426, %v927
      %v1003 = vadd.f32 %v427, %v929
      %v1004 = vadd.f32 %v428, %v932
      %v1005 = vadd.f32 %v429, %v934
      %v1006 = vadd.f32 %v430, %v937
      %v1007 = vadd.f32 %v431, %v939
      %v1008 = vadd.f32 %v432, %v942
      %v1009 = vadd.f32 %v433, %v944
      %vm1010 = vcmask 523264
      %1011 = vst.msk [vmem:[#allocation2] sm:$0xff] %vm1010, %v946
      %1012 = vst.msk [vmem:[#allocation2 + $0x8] sm:$0xff] %vm1010, %v947
      %1013 = vst.msk [vmem:[#allocation2 + $0x10] sm:$0xff] %vm1010, %v948
      %1014 = vst.msk [vmem:[#allocation2 + $0x18] sm:$0xff] %vm1010, %v949
      %1015 = vst.msk [vmem:[#allocation2 + $0x20] sm:$0xff] %vm1010, %v950
      %1016 = vst.msk [vmem:[#allocation2 + $0x28] sm:$0xff] %vm1010, %v951
      %1017 = vst.msk [vmem:[#allocation2 + $0x30] sm:$0xff] %vm1010, %v952
      %1018 = vst.msk [vmem:[#allocation2 + $0x38] sm:$0xff] %vm1010, %v953
      %1019 = vst.msk [vmem:[#allocation2 + $0x40] sm:$0xff] %vm1010, %v954
      %1020 = vst.msk [vmem:[#allocation2 + $0x48] sm:$0xff] %vm1010, %v955
      %1021 = vst.msk [vmem:[#allocation2 + $0x50] sm:$0xff] %vm1010, %v956
      %1022 = vst.msk [vmem:[#allocation2 + $0x58] sm:$0xff] %vm1010, %v957
      %1023 = vst.msk [vmem:[#allocation2 + $0x60] sm:$0xff] %vm1010, %v958
      %1024 = vst.msk [vmem:[#allocation2 + $0x68] sm:$0xff] %vm1010, %v959
      %1025 = vst.msk [vmem:[#allocation2 + $0x70] sm:$0xff] %vm1010, %v960
      %1026 = vst.msk [vmem:[#allocation2 + $0x78] sm:$0xff] %vm1010, %v961
      %1027 = vst.msk [vmem:[#allocation2 + $0x80] sm:$0xff] %vm1010, %v962
      %1028 = vst.msk [vmem:[#allocation2 + $0x88] sm:$0xff] %vm1010, %v963
      %1029 = vst.msk [vmem:[#allocation2 + $0x90] sm:$0xff] %vm1010, %v964
      %1030 = vst.msk [vmem:[#allocation2 + $0x98] sm:$0xff] %vm1010, %v965
      %1031 = vst.msk [vmem:[#allocation2 + $0xa0] sm:$0xff] %vm1010, %v966
      %1032 = vst.msk [vmem:[#allocation2 + $0xa8] sm:$0xff] %vm1010, %v967
      %1033 = vst.msk [vmem:[#allocation2 + $0xb0] sm:$0xff] %vm1010, %v968
      %1034 = vst.msk [vmem:[#allocation2 + $0xb8] sm:$0xff] %vm1010, %v969
      %1035 = vst.msk [vmem:[#allocation2 + $0xc0] sm:$0xff] %vm1010, %v970
      %1036 = vst.msk [vmem:[#allocation2 + $0xc8] sm:$0xff] %vm1010, %v971
      %1037 = vst.msk [vmem:[#allocation2 + $0xd0] sm:$0xff] %vm1010, %v972
      %1038 = vst.msk [vmem:[#allocation2 + $0xd8] sm:$0xff] %vm1010, %v973
      %1039 = vst.msk [vmem:[#allocation2 + $0xe0] sm:$0xff] %vm1010, %v974
      %1040 = vst.msk [vmem:[#allocation2 + $0xe8] sm:$0xff] %vm1010, %v975
      %1041 = vst.msk [vmem:[#allocation2 + $0xf0] sm:$0xff] %vm1010, %v976
      %1042 = vst.msk [vmem:[#allocation2 + $0xf8] sm:$0xff] %vm1010, %v977
      %1043 = vst.msk [vmem:[#allocation2 + $0x100] sm:$0xff] %vm1010, %v978
      %1044 = vst.msk [vmem:[#allocation2 + $0x108] sm:$0xff] %vm1010, %v979
      %1045 = vst.msk [vmem:[#allocation2 + $0x110] sm:$0xff] %vm1010, %v980
      %1046 = vst.msk [vmem:[#allocation2 + $0x118] sm:$0xff] %vm1010, %v981
      %1047 = vst.msk [vmem:[#allocation2 + $0x120] sm:$0xff] %vm1010, %v982
      %1048 = vst.msk [vmem:[#allocation2 + $0x128] sm:$0xff] %vm1010, %v983
      %1049 = vst.msk [vmem:[#allocation2 + $0x130] sm:$0xff] %vm1010, %v984
      %1050 = vst.msk [vmem:[#allocation2 + $0x138] sm:$0xff] %vm1010, %v985
      %1051 = vst.msk [vmem:[#allocation2 + $0x140] sm:$0xff] %vm1010, %v986
      %1052 = vst.msk [vmem:[#allocation2 + $0x148] sm:$0xff] %vm1010, %v987
      %1053 = vst.msk [vmem:[#allocation2 + $0x150] sm:$0xff] %vm1010, %v988
      %1054 = vst.msk [vmem:[#allocation2 + $0x158] sm:$0xff] %vm1010, %v989
      %1055 = vst.msk [vmem:[#allocation2 + $0x160] sm:$0xff] %vm1010, %v990
      %1056 = vst.msk [vmem:[#allocation2 + $0x168] sm:$0xff] %vm1010, %v991
      %1057 = vst.msk [vmem:[#allocation2 + $0x170] sm:$0xff] %vm1010, %v992
      %1058 = vst.msk [vmem:[#allocation2 + $0x178] sm:$0xff] %vm1010, %v993
      %1059 = vst.msk [vmem:[#allocation2 + $0x180] sm:$0xff] %vm1010, %v994
      %1060 = vst.msk [vmem:[#allocation2 + $0x188] sm:$0xff] %vm1010, %v995
      %1061 = vst.msk [vmem:[#allocation2 + $0x190] sm:$0xff] %vm1010, %v996
      %1062 = vst.msk [vmem:[#allocation2 + $0x198] sm:$0xff] %vm1010, %v997
      %1063 = vst.msk [vmem:[#allocation2 + $0x1a0] sm:$0xff] %vm1010, %v998
      %1064 = vst.msk [vmem:[#allocation2 + $0x1a8] sm:$0xff] %vm1010, %v999
      %1065 = vst.msk [vmem:[#allocation2 + $0x1b0] sm:$0xff] %vm1010, %v1000
      %1066 = vst.msk [vmem:[#allocation2 + $0x1b8] sm:$0xff] %vm1010, %v1001
      %1067 = vst.msk [vmem:[#allocation2 + $0x1c0] sm:$0xff] %vm1010, %v1002
      %1068 = vst.msk [vmem:[#allocation2 + $0x1c8] sm:$0xff] %vm1010, %v1003
      %1069 = vst.msk [vmem:[#allocation2 + $0x1d0] sm:$0xff] %vm1010, %v1004
      %1070 = vst.msk [vmem:[#allocation2 + $0x1d8] sm:$0xff] %vm1010, %v1005
      %1071 = vst.msk [vmem:[#allocation2 + $0x1e0] sm:$0xff] %vm1010, %v1006
      %1072 = vst.msk [vmem:[#allocation2 + $0x1e8] sm:$0xff] %vm1010, %v1007
      %1073 = vst.msk [vmem:[#allocation2 + $0x1f0] sm:$0xff] %vm1010, %v1008
      %1074 = vst.msk [vmem:[#allocation2 + $0x1f8] sm:$0xff] %vm1010, %v1009
      // Predicated region
      $region41: #{conv_generic.1} parent=35 // pred_check
        %p1075 = pneg %p301
      $region42: #{conv_generic.1} parent=35 // pred_check_branch
        %1077 = sbr.rel (%p1075) target = $region44
      $region43: #{conv_generic.1} parent=35 // pred_region
        %v1078 = vld [vmem:[#allocation2] sm:$0xff]
        %v1079 = vld [vmem:[#allocation2 + $0x8] sm:$0xff]
        %v1080 = vld [vmem:[#allocation2 + $0x10] sm:$0xff]
        %v1081 = vld [vmem:[#allocation2 + $0x18] sm:$0xff]
        %v1082 = vld [vmem:[#allocation2 + $0x20] sm:$0xff]
        %v1083 = vld [vmem:[#allocation2 + $0x28] sm:$0xff]
        %v1084 = vld [vmem:[#allocation2 + $0x30] sm:$0xff]
        %v1085 = vld [vmem:[#allocation2 + $0x38] sm:$0xff]
        %v1086 = vld [vmem:[#allocation2 + $0x40] sm:$0xff]
        %v1087 = vld [vmem:[#allocation2 + $0x48] sm:$0xff]
        %v1088 = vld [vmem:[#allocation2 + $0x50] sm:$0xff]
        %v1089 = vld [vmem:[#allocation2 + $0x58] sm:$0xff]
        %v1090 = vld [vmem:[#allocation2 + $0x60] sm:$0xff]
        %v1091 = vld [vmem:[#allocation2 + $0x68] sm:$0xff]
        %v1092 = vld [vmem:[#allocation2 + $0x70] sm:$0xff]
        %v1093 = vld [vmem:[#allocation2 + $0x78] sm:$0xff]
        %v1094 = vld [vmem:[#allocation2 + $0x80] sm:$0xff]
        %v1095 = vld [vmem:[#allocation2 + $0x88] sm:$0xff]
        %v1096 = vld [vmem:[#allocation2 + $0x90] sm:$0xff]
        %v1097 = vld [vmem:[#allocation2 + $0x98] sm:$0xff]
        %v1098 = vld [vmem:[#allocation2 + $0xa0] sm:$0xff]
        %v1099 = vld [vmem:[#allocation2 + $0xa8] sm:$0xff]
        %v1100 = vld [vmem:[#allocation2 + $0xb0] sm:$0xff]
        %v1101 = vld [vmem:[#allocation2 + $0xb8] sm:$0xff]
        %v1102 = vld [vmem:[#allocation2 + $0xc0] sm:$0xff]
        %v1103 = vld [vmem:[#allocation2 + $0xc8] sm:$0xff]
        %v1104 = vld [vmem:[#allocation2 + $0xd0] sm:$0xff]
        %v1105 = vld [vmem:[#allocation2 + $0xd8] sm:$0xff]
        %v1106 = vld [vmem:[#allocation2 + $0xe0] sm:$0xff]
        %v1107 = vld [vmem:[#allocation2 + $0xe8] sm:$0xff]
        %v1108 = vld [vmem:[#allocation2 + $0xf0] sm:$0xff]
        %v1109 = vld [vmem:[#allocation2 + $0xf8] sm:$0xff]
        %v1110 = vld [vmem:[#allocation2 + $0x100] sm:$0xff]
        %v1111 = vld [vmem:[#allocation2 + $0x108] sm:$0xff]
        %v1112 = vld [vmem:[#allocation2 + $0x110] sm:$0xff]
        %v1113 = vld [vmem:[#allocation2 + $0x118] sm:$0xff]
        %v1114 = vld [vmem:[#allocation2 + $0x120] sm:$0xff]
        %v1115 = vld [vmem:[#allocation2 + $0x128] sm:$0xff]
        %v1116 = vld [vmem:[#allocation2 + $0x130] sm:$0xff]
        %v1117 = vld [vmem:[#allocation2 + $0x138] sm:$0xff]
        %v1118 = vld [vmem:[#allocation2 + $0x140] sm:$0xff]
        %v1119 = vld [vmem:[#allocation2 + $0x148] sm:$0xff]
        %v1120 = vld [vmem:[#allocation2 + $0x150] sm:$0xff]
        %v1121 = vld [vmem:[#allocation2 + $0x158] sm:$0xff]
        %v1122 = vld [vmem:[#allocation2 + $0x160] sm:$0xff]
        %v1123 = vld [vmem:[#allocation2 + $0x168] sm:$0xff]
        %v1124 = vld [vmem:[#allocation2 + $0x170] sm:$0xff]
        %v1125 = vld [vmem:[#allocation2 + $0x178] sm:$0xff]
        %v1126 = vld [vmem:[#allocation2 + $0x180] sm:$0xff]
        %v1127 = vld [vmem:[#allocation2 + $0x188] sm:$0xff]
        %v1128 = vld [vmem:[#allocation2 + $0x190] sm:$0xff]
        %v1129 = vld [vmem:[#allocation2 + $0x198] sm:$0xff]
        %v1130 = vld [vmem:[#allocation2 + $0x1a0] sm:$0xff]
        %v1131 = vld [vmem:[#allocation2 + $0x1a8] sm:$0xff]
        %v1132 = vld [vmem:[#allocation2 + $0x1b0] sm:$0xff]
        %v1133 = vld [vmem:[#allocation2 + $0x1b8] sm:$0xff]
        %v1134 = vld [vmem:[#allocation2 + $0x1c0] sm:$0xff]
        %v1135 = vld [vmem:[#allocation2 + $0x1c8] sm:$0xff]
        %v1136 = vld [vmem:[#allocation2 + $0x1d0] sm:$0xff]
        %v1137 = vld [vmem:[#allocation2 + $0x1d8] sm:$0xff]
        %v1138 = vld [vmem:[#allocation2 + $0x1e0] sm:$0xff]
        %v1139 = vld [vmem:[#allocation2 + $0x1e8] sm:$0xff]
        %v1140 = vld [vmem:[#allocation2 + $0x1f0] sm:$0xff]
        %v1141 = vld [vmem:[#allocation2 + $0x1f8] sm:$0xff]
        %v1142 = vld [vmem:[%s287] sm:$0x1]
        %v1144 = vperm.slane %v1142, 0
        %v1146 = vmul.f32 %v1078, %v1144
        %v1147 = vmul.f32 %v1079, %v1144
        %v1148 = vmul.f32 %v1080, %v1144
        %v1149 = vmul.f32 %v1081, %v1144
        %v1150 = vmul.f32 %v1082, %v1144
        %v1151 = vmul.f32 %v1083, %v1144
        %v1152 = vmul.f32 %v1084, %v1144
        %v1153 = vmul.f32 %v1085, %v1144
        %v1154 = vmul.f32 %v1086, %v1144
        %v1155 = vmul.f32 %v1087, %v1144
        %v1156 = vmul.f32 %v1088, %v1144
        %v1157 = vmul.f32 %v1089, %v1144
        %v1158 = vmul.f32 %v1090, %v1144
        %v1159 = vmul.f32 %v1091, %v1144
        %v1160 = vmul.f32 %v1092, %v1144
        %v1161 = vmul.f32 %v1093, %v1144
        %v1162 = vmul.f32 %v1094, %v1144
        %v1163 = vmul.f32 %v1095, %v1144
        %v1164 = vmul.f32 %v1096, %v1144
        %v1165 = vmul.f32 %v1097, %v1144
        %v1166 = vmul.f32 %v1098, %v1144
        %v1167 = vmul.f32 %v1099, %v1144
        %v1168 = vmul.f32 %v1100, %v1144
        %v1169 = vmul.f32 %v1101, %v1144
        %v1170 = vmul.f32 %v1102, %v1144
        %v1171 = vmul.f32 %v1103, %v1144
        %v1172 = vmul.f32 %v1104, %v1144
        %v1173 = vmul.f32 %v1105, %v1144
        %v1174 = vmul.f32 %v1106, %v1144
        %v1175 = vmul.f32 %v1107, %v1144
        %v1176 = vmul.f32 %v1108, %v1144
        %v1177 = vmul.f32 %v1109, %v1144
        %v1178 = vmul.f32 %v1110, %v1144
        %v1179 = vmul.f32 %v1111, %v1144
        %v1180 = vmul.f32 %v1112, %v1144
        %v1181 = vmul.f32 %v1113, %v1144
        %v1182 = vmul.f32 %v1114, %v1144
        %v1183 = vmul.f32 %v1115, %v1144
        %v1184 = vmul.f32 %v1116, %v1144
        %v1185 = vmul.f32 %v1117, %v1144
        %v1186 = vmul.f32 %v1118, %v1144
        %v1187 = vmul.f32 %v1119, %v1144
        %v1188 = vmul.f32 %v1120, %v1144
        %v1189 = vmul.f32 %v1121, %v1144
        %v1190 = vmul.f32 %v1122, %v1144
        %v1191 = vmul.f32 %v1123, %v1144
        %v1192 = vmul.f32 %v1124, %v1144
        %v1193 = vmul.f32 %v1125, %v1144
        %v1194 = vmul.f32 %v1126, %v1144
        %v1195 = vmul.f32 %v1127, %v1144
        %v1196 = vmul.f32 %v1128, %v1144
        %v1197 = vmul.f32 %v1129, %v1144
        %v1198 = vmul.f32 %v1130, %v1144
        %v1199 = vmul.f32 %v1131, %v1144
        %v1200 = vmul.f32 %v1132, %v1144
        %v1201 = vmul.f32 %v1133, %v1144
        %v1202 = vmul.f32 %v1134, %v1144
        %v1203 = vmul.f32 %v1135, %v1144
        %v1204 = vmul.f32 %v1136, %v1144
        %v1205 = vmul.f32 %v1137, %v1144
        %v1206 = vmul.f32 %v1138, %v1144
        %v1207 = vmul.f32 %v1139, %v1144
        %v1208 = vmul.f32 %v1140, %v1144
        %v1209 = vmul.f32 %v1141, %v1144
        %v1210 = vld [vmem:[%s290] sm:$0x1]
        %v1212 = vperm.slane %v1210, 0
        %v1214 = vadd.f32 %v1146, %v1212
        %v1215 = vadd.f32 %v1147, %v1212
        %v1216 = vadd.f32 %v1148, %v1212
        %v1217 = vadd.f32 %v1149, %v1212
        %v1218 = vadd.f32 %v1150, %v1212
        %v1219 = vadd.f32 %v1151, %v1212
        %v1220 = vadd.f32 %v1152, %v1212
        %v1221 = vadd.f32 %v1153, %v1212
        %v1222 = vadd.f32 %v1154, %v1212
        %v1223 = vadd.f32 %v1155, %v1212
        %v1224 = vadd.f32 %v1156, %v1212
        %v1225 = vadd.f32 %v1157, %v1212
        %v1226 = vadd.f32 %v1158, %v1212
        %v1227 = vadd.f32 %v1159, %v1212
        %v1228 = vadd.f32 %v1160, %v1212
        %v1229 = vadd.f32 %v1161, %v1212
        %v1230 = vadd.f32 %v1162, %v1212
        %v1231 = vadd.f32 %v1163, %v1212
        %v1232 = vadd.f32 %v1164, %v1212
        %v1233 = vadd.f32 %v1165, %v1212
        %v1234 = vadd.f32 %v1166, %v1212
        %v1235 = vadd.f32 %v1167, %v1212
        %v1236 = vadd.f32 %v1168, %v1212
        %v1237 = vadd.f32 %v1169, %v1212
        %v1238 = vadd.f32 %v1170, %v1212
        %v1239 = vadd.f32 %v1171, %v1212
        %v1240 = vadd.f32 %v1172, %v1212
        %v1241 = vadd.f32 %v1173, %v1212
        %v1242 = vadd.f32 %v1174, %v1212
        %v1243 = vadd.f32 %v1175, %v1212
        %v1244 = vadd.f32 %v1176, %v1212
        %v1245 = vadd.f32 %v1177, %v1212
        %v1246 = vadd.f32 %v1178, %v1212
        %v1247 = vadd.f32 %v1179, %v1212
        %v1248 = vadd.f32 %v1180, %v1212
        %v1249 = vadd.f32 %v1181, %v1212
        %v1250 = vadd.f32 %v1182, %v1212
        %v1251 = vadd.f32 %v1183, %v1212
        %v1252 = vadd.f32 %v1184, %v1212
        %v1253 = vadd.f32 %v1185, %v1212
        %v1254 = vadd.f32 %v1186, %v1212
        %v1255 = vadd.f32 %v1187, %v1212
        %v1256 = vadd.f32 %v1188, %v1212
        %v1257 = vadd.f32 %v1189, %v1212
        %v1258 = vadd.f32 %v1190, %v1212
        %v1259 = vadd.f32 %v1191, %v1212
        %v1260 = vadd.f32 %v1192, %v1212
        %v1261 = vadd.f32 %v1193, %v1212
        %v1262 = vadd.f32 %v1194, %v1212
        %v1263 = vadd.f32 %v1195, %v1212
        %v1264 = vadd.f32 %v1196, %v1212
        %v1265 = vadd.f32 %v1197, %v1212
        %v1266 = vadd.f32 %v1198, %v1212
        %v1267 = vadd.f32 %v1199, %v1212
        %v1268 = vadd.f32 %v1200, %v1212
        %v1269 = vadd.f32 %v1201, %v1212
        %v1270 = vadd.f32 %v1202, %v1212
        %v1271 = vadd.f32 %v1203, %v1212
        %v1272 = vadd.f32 %v1204, %v1212
        %v1273 = vadd.f32 %v1205, %v1212
        %v1274 = vadd.f32 %v1206, %v1212
        %v1275 = vadd.f32 %v1207, %v1212
        %v1276 = vadd.f32 %v1208, %v1212
        %v1277 = vadd.f32 %v1209, %v1212
        %v1278 = vmax.f32 %v1214, 0.0
        %v1279 = vmax.f32 %v1215, 0.0
        %v1280 = vmax.f32 %v1216, 0.0
        %v1281 = vmax.f32 %v1217, 0.0
        %v1282 = vmax.f32 %v1218, 0.0
        %v1283 = vmax.f32 %v1219, 0.0
        %v1284 = vmax.f32 %v1220, 0.0
        %v1285 = vmax.f32 %v1221, 0.0
        %v1286 = vmax.f32 %v1222, 0.0
        %v1287 = vmax.f32 %v1223, 0.0
        %v1288 = vmax.f32 %v1224, 0.0
        %v1289 = vmax.f32 %v1225, 0.0
        %v1290 = vmax.f32 %v1226, 0.0
        %v1291 = vmax.f32 %v1227, 0.0
        %v1292 = vmax.f32 %v1228, 0.0
        %v1293 = vmax.f32 %v1229, 0.0
        %v1294 = vmax.f32 %v1230, 0.0
        %v1295 = vmax.f32 %v1231, 0.0
        %v1296 = vmax.f32 %v1232, 0.0
        %v1297 = vmax.f32 %v1233, 0.0
        %v1298 = vmax.f32 %v1234, 0.0
        %v1299 = vmax.f32 %v1235, 0.0
        %v1300 = vmax.f32 %v1236, 0.0
        %v1301 = vmax.f32 %v1237, 0.0
        %v1302 = vmax.f32 %v1238, 0.0
        %v1303 = vmax.f32 %v1239, 0.0
        %v1304 = vmax.f32 %v1240, 0.0
        %v1305 = vmax.f32 %v1241, 0.0
        %v1306 = vmax.f32 %v1242, 0.0
        %v1307 = vmax.f32 %v1243, 0.0
        %v1308 = vmax.f32 %v1244, 0.0
        %v1309 = vmax.f32 %v1245, 0.0
        %v1310 = vmax.f32 %v1246, 0.0
        %v1311 = vmax.f32 %v1247, 0.0
        %v1312 = vmax.f32 %v1248, 0.0
        %v1313 = vmax.f32 %v1249, 0.0
        %v1314 = vmax.f32 %v1250, 0.0
        %v1315 = vmax.f32 %v1251, 0.0
        %v1316 = vmax.f32 %v1252, 0.0
        %v1317 = vmax.f32 %v1253, 0.0
        %v1318 = vmax.f32 %v1254, 0.0
        %v1319 = vmax.f32 %v1255, 0.0
        %v1320 = vmax.f32 %v1256, 0.0
        %v1321 = vmax.f32 %v1257, 0.0
        %v1322 = vmax.f32 %v1258, 0.0
        %v1323 = vmax.f32 %v1259, 0.0
        %v1324 = vmax.f32 %v1260, 0.0
        %v1325 = vmax.f32 %v1261, 0.0
        %v1326 = vmax.f32 %v1262, 0.0
        %v1327 = vmax.f32 %v1263, 0.0
        %v1328 = vmax.f32 %v1264, 0.0
        %v1329 = vmax.f32 %v1265, 0.0
        %v1330 = vmax.f32 %v1266, 0.0
        %v1331 = vmax.f32 %v1267, 0.0
        %v1332 = vmax.f32 %v1268, 0.0
        %v1333 = vmax.f32 %v1269, 0.0
        %v1334 = vmax.f32 %v1270, 0.0
        %v1335 = vmax.f32 %v1271, 0.0
        %v1336 = vmax.f32 %v1272, 0.0
        %v1337 = vmax.f32 %v1273, 0.0
        %v1338 = vmax.f32 %v1274, 0.0
        %v1339 = vmax.f32 %v1275, 0.0
        %v1340 = vmax.f32 %v1276, 0.0
        %v1341 = vmax.f32 %v1277, 0.0
        %v1342 = vpack.c.bf16 %v1278, %v1278
        %v1343 = vpack.c.bf16 %v1279, %v1279
        %v1344 = vpack.c.bf16 %v1280, %v1280
        %v1345 = vpack.c.bf16 %v1281, %v1281
        %v1346 = vpack.c.bf16 %v1282, %v1282
        %v1347 = vpack.c.bf16 %v1283, %v1283
        %v1348 = vpack.c.bf16 %v1284, %v1284
        %v1349 = vpack.c.bf16 %v1285, %v1285
        %v1350 = vpack.c.bf16 %v1286, %v1286
        %v1351 = vpack.c.bf16 %v1287, %v1287
        %v1352 = vpack.c.bf16 %v1288, %v1288
        %v1353 = vpack.c.bf16 %v1289, %v1289
        %v1354 = vpack.c.bf16 %v1290, %v1290
        %v1355 = vpack.c.bf16 %v1291, %v1291
        %v1356 = vpack.c.bf16 %v1292, %v1292
        %v1357 = vpack.c.bf16 %v1293, %v1293
        %v1358 = vpack.c.bf16 %v1294, %v1294
        %v1359 = vpack.c.bf16 %v1295, %v1295
        %v1360 = vpack.c.bf16 %v1296, %v1296
        %v1361 = vpack.c.bf16 %v1297, %v1297
        %v1362 = vpack.c.bf16 %v1298, %v1298
        %v1363 = vpack.c.bf16 %v1299, %v1299
        %v1364 = vpack.c.bf16 %v1300, %v1300
        %v1365 = vpack.c.bf16 %v1301, %v1301
        %v1366 = vpack.c.bf16 %v1302, %v1302
        %v1367 = vpack.c.bf16 %v1303, %v1303
        %v1368 = vpack.c.bf16 %v1304, %v1304
        %v1369 = vpack.c.bf16 %v1305, %v1305
        %v1370 = vpack.c.bf16 %v1306, %v1306
        %v1371 = vpack.c.bf16 %v1307, %v1307
        %v1372 = vpack.c.bf16 %v1308, %v1308
        %v1373 = vpack.c.bf16 %v1309, %v1309
        %v1374 = vpack.c.bf16 %v1310, %v1310
        %v1375 = vpack.c.bf16 %v1311, %v1311
        %v1376 = vpack.c.bf16 %v1312, %v1312
        %v1377 = vpack.c.bf16 %v1313, %v1313
        %v1378 = vpack.c.bf16 %v1314, %v1314
        %v1379 = vpack.c.bf16 %v1315, %v1315
        %v1380 = vpack.c.bf16 %v1316, %v1316
        %v1381 = vpack.c.bf16 %v1317, %v1317
        %v1382 = vpack.c.bf16 %v1318, %v1318
        %v1383 = vpack.c.bf16 %v1319, %v1319
        %v1384 = vpack.c.bf16 %v1320, %v1320
        %v1385 = vpack.c.bf16 %v1321, %v1321
        %v1386 = vpack.c.bf16 %v1322, %v1322
        %v1387 = vpack.c.bf16 %v1323, %v1323
        %v1388 = vpack.c.bf16 %v1324, %v1324
        %v1389 = vpack.c.bf16 %v1325, %v1325
        %v1390 = vpack.c.bf16 %v1326, %v1326
        %v1391 = vpack.c.bf16 %v1327, %v1327
        %v1392 = vpack.c.bf16 %v1328, %v1328
        %v1393 = vpack.c.bf16 %v1329, %v1329
        %v1394 = vpack.c.bf16 %v1330, %v1330
        %v1395 = vpack.c.bf16 %v1331, %v1331
        %v1396 = vpack.c.bf16 %v1332, %v1332
        %v1397 = vpack.c.bf16 %v1333, %v1333
        %v1398 = vpack.c.bf16 %v1334, %v1334
        %v1399 = vpack.c.bf16 %v1335, %v1335
        %v1400 = vpack.c.bf16 %v1336, %v1336
        %v1401 = vpack.c.bf16 %v1337, %v1337
        %v1402 = vpack.c.bf16 %v1338, %v1338
        %v1403 = vpack.c.bf16 %v1339, %v1339
        %v1404 = vpack.c.bf16 %v1340, %v1340
        %v1405 = vpack.c.bf16 %v1341, %v1341
        %vm1406 = vcmask 519168
        %1407 = vst.msk [vmem:[%s298] sm:$0xf] %vm1406, %v1342
        %1408 = vst.msk [vmem:[%s298 + $0x4] sm:$0xf] %vm1406, %v1343
        %1409 = vst.msk [vmem:[%s298 + $0x8] sm:$0xf] %vm1406, %v1344
        %1410 = vst.msk [vmem:[%s298 + $0xc] sm:$0xf] %vm1406, %v1345
        %1411 = vst.msk [vmem:[%s298 + $0x10] sm:$0xf] %vm1406, %v1346
        %1412 = vst.msk [vmem:[%s298 + $0x14] sm:$0xf] %vm1406, %v1347
        %1413 = vst.msk [vmem:[%s298 + $0x18] sm:$0xf] %vm1406, %v1348
        %1414 = vst.msk [vmem:[%s298 + $0x1c] sm:$0xf] %vm1406, %v1349
        %1415 = vst.msk [vmem:[%s298 + $0x20] sm:$0xf] %vm1406, %v1350
        %1416 = vst.msk [vmem:[%s298 + $0x24] sm:$0xf] %vm1406, %v1351
        %1417 = vst.msk [vmem:[%s298 + $0x28] sm:$0xf] %vm1406, %v1352
        %1418 = vst.msk [vmem:[%s298 + $0x2c] sm:$0xf] %vm1406, %v1353
        %1419 = vst.msk [vmem:[%s298 + $0x30] sm:$0xf] %vm1406, %v1354
        %1420 = vst.msk [vmem:[%s298 + $0x34] sm:$0xf] %vm1406, %v1355
        %1421 = vst.msk [vmem:[%s298 + $0x38] sm:$0xf] %vm1406, %v1356
        %1422 = vst.msk [vmem:[%s298 + $0x3c] sm:$0xf] %vm1406, %v1357
        %1423 = vst.msk [vmem:[%s298 + $0x40] sm:$0xf] %vm1406, %v1358
        %1424 = vst.msk [vmem:[%s298 + $0x44] sm:$0xf] %vm1406, %v1359
        %1425 = vst.msk [vmem:[%s298 + $0x48] sm:$0xf] %vm1406, %v1360
        %1426 = vst.msk [vmem:[%s298 + $0x4c] sm:$0xf] %vm1406, %v1361
        %1427 = vst.msk [vmem:[%s298 + $0x50] sm:$0xf] %vm1406, %v1362
        %1428 = vst.msk [vmem:[%s298 + $0x54] sm:$0xf] %vm1406, %v1363
        %1429 = vst.msk [vmem:[%s298 + $0x58] sm:$0xf] %vm1406, %v1364
        %1430 = vst.msk [vmem:[%s298 + $0x5c] sm:$0xf] %vm1406, %v1365
        %1431 = vst.msk [vmem:[%s298 + $0x60] sm:$0xf] %vm1406, %v1366
        %1432 = vst.msk [vmem:[%s298 + $0x64] sm:$0xf] %vm1406, %v1367
        %1433 = vst.msk [vmem:[%s298 + $0x68] sm:$0xf] %vm1406, %v1368
        %1434 = vst.msk [vmem:[%s298 + $0x6c] sm:$0xf] %vm1406, %v1369
        %1435 = vst.msk [vmem:[%s298 + $0x70] sm:$0xf] %vm1406, %v1370
        %1436 = vst.msk [vmem:[%s298 + $0x74] sm:$0xf] %vm1406, %v1371
        %1437 = vst.msk [vmem:[%s298 + $0x78] sm:$0xf] %vm1406, %v1372
        %1438 = vst.msk [vmem:[%s298 + $0x7c] sm:$0xf] %vm1406, %v1373
        %1439 = vst.msk [vmem:[%s298 + $0x80] sm:$0xf] %vm1406, %v1374
        %1440 = vst.msk [vmem:[%s298 + $0x84] sm:$0xf] %vm1406, %v1375
        %1441 = vst.msk [vmem:[%s298 + $0x88] sm:$0xf] %vm1406, %v1376
        %1442 = vst.msk [vmem:[%s298 + $0x8c] sm:$0xf] %vm1406, %v1377
        %1443 = vst.msk [vmem:[%s298 + $0x90] sm:$0xf] %vm1406, %v1378
        %1444 = vst.msk [vmem:[%s298 + $0x94] sm:$0xf] %vm1406, %v1379
        %1445 = vst.msk [vmem:[%s298 + $0x98] sm:$0xf] %vm1406, %v1380
        %1446 = vst.msk [vmem:[%s298 + $0x9c] sm:$0xf] %vm1406, %v1381
        %1447 = vst.msk [vmem:[%s298 + $0xa0] sm:$0xf] %vm1406, %v1382
        %1448 = vst.msk [vmem:[%s298 + $0xa4] sm:$0xf] %vm1406, %v1383
        %1449 = vst.msk [vmem:[%s298 + $0xa8] sm:$0xf] %vm1406, %v1384
        %1450 = vst.msk [vmem:[%s298 + $0xac] sm:$0xf] %vm1406, %v1385
        %1451 = vst.msk [vmem:[%s298 + $0xb0] sm:$0xf] %vm1406, %v1386
        %1452 = vst.msk [vmem:[%s298 + $0xb4] sm:$0xf] %vm1406, %v1387
        %1453 = vst.msk [vmem:[%s298 + $0xb8] sm:$0xf] %vm1406, %v1388
        %1454 = vst.msk [vmem:[%s298 + $0xbc] sm:$0xf] %vm1406, %v1389
        %1455 = vst.msk [vmem:[%s298 + $0xc0] sm:$0xf] %vm1406, %v1390
        %1456 = vst.msk [vmem:[%s298 + $0xc4] sm:$0xf] %vm1406, %v1391
        %1457 = vst.msk [vmem:[%s298 + $0xc8] sm:$0xf] %vm1406, %v1392
        %1458 = vst.msk [vmem:[%s298 + $0xcc] sm:$0xf] %vm1406, %v1393
        %1459 = vst.msk [vmem:[%s298 + $0xd0] sm:$0xf] %vm1406, %v1394
        %1460 = vst.msk [vmem:[%s298 + $0xd4] sm:$0xf] %vm1406, %v1395
        %1461 = vst.msk [vmem:[%s298 + $0xd8] sm:$0xf] %vm1406, %v1396
        %1462 = vst.msk [vmem:[%s298 + $0xdc] sm:$0xf] %vm1406, %v1397
        %1463 = vst.msk [vmem:[%s298 + $0xe0] sm:$0xf] %vm1406, %v1398
        %1464 = vst.msk [vmem:[%s298 + $0xe4] sm:$0xf] %vm1406, %v1399
        %1465 = vst.msk [vmem:[%s298 + $0xe8] sm:$0xf] %vm1406, %v1400
        %1466 = vst.msk [vmem:[%s298 + $0xec] sm:$0xf] %vm1406, %v1401
        %1467 = vst.msk [vmem:[%s298 + $0xf0] sm:$0xf] %vm1406, %v1402
        %1468 = vst.msk [vmem:[%s298 + $0xf4] sm:$0xf] %vm1406, %v1403
        %1469 = vst.msk [vmem:[%s298 + $0xf8] sm:$0xf] %vm1406, %v1404
        %1470 = vst.msk [vmem:[%s298 + $0xfc] sm:$0xf] %vm1406, %v1405
      $region44: #{conv_generic.1} parent=35 // pred_fallthru
        _
      %s1471 = smul.u32 64, %s20
      %p1472 = scmp.lt.s32.totalorder %s1471, 2047
      %s1473 = scalar_select %p1472, %s1471, 2047
      %p1474 = scmp.lt.s32.totalorder %s21, 0
      %s1475 = scalar_select %p1474, %s21, 0
      %s1476 = sadd.s32 %s1475, %s1473
      %s1477 = smul.addr %s1476, 4
      %s1478 = scalar_lea.vmem %s4, %s1477
      // Predicated region
      $region45: #{conv_generic.1} parent=35 // pred_check
        %p1479 = pneg %p162
      $region46: #{conv_generic.1} parent=35 // pred_check_branch
        %1481 = sbr.rel (%p1479) target = $region48
      $region47: #{conv_generic.1} parent=35 // pred_region
        %s1482 = smul.u32 64, %s20
      $region48: #{conv_generic.1} parent=35 // pred_fallthru
        _
    $region36: #{conv_generic.1} parent=5 // pred_fallthru
      _
    %p1483 = scmp.le.s32.totalorder 2, %s10
    // Predicated region
    $region49: #{conv_generic.1} parent=5 // pred_check
      %p1484 = pneg %p1483
    $region50: #{conv_generic.1} parent=5 // pred_check_branch
      %1486 = sbr.rel (%p1484) target = $region52
    $region51: #{conv_generic.1} parent=5 // pred_region
      %s1487 = ssub.s32 %s10, 2
      // Predicated region
      $region53: #{conv_generic.1} parent=51 // pred_check
        %p1488 = pneg %p168
      $region54: #{conv_generic.1} parent=51 // pred_check_branch
        %1490 = sbr.rel (%p1488) target = $region56
      $region55: #{conv_generic.1} parent=51 // pred_region
        %s1491 = smul.u32 64, %s23
        %p1492 = scmp.lt.s32.totalorder %s1491, 2047
        %s1493 = scalar_select %p1492, %s1491, 2047
        %p1494 = scmp.lt.s32.totalorder %s24, 0
        %s1495 = scalar_select %p1494, %s24, 0
        %s1496 = sadd.s32 %s1495, %s1493
        %s1497 = smul.addr %s1496, 4
        %s1498 = scalar_lea.vmem %s4, %s1497
      $region56: #{conv_generic.1} parent=51 // pred_fallthru
        _
    $region52: #{conv_generic.1} parent=5 // pred_fallthru
      _
  $region6: #{conv_generic.1} parent=0 // loop_footer
    %s14 = sadd.s32 1, %s10
  $region7: #{conv_generic.1} parent=0 // loop_footer_branch
    %9 = sbr.rel target = $region3
  $region8: #{conv_generic.1} parent=0 // loop_exit
    _

</llo_original>
